<compile_context>
chip_gen: v7x
topology: tpu7x:2x2x1
jax: 0.10.0
libtpu: 0.0.40
codegen_flags: <defaults>
</compile_context>

<pallas_src>
import functools

import jax
import jax.numpy as jnp
import numpy as np
from jax.experimental import pallas as pl
from jax.experimental.pallas import tpu as pltpu

VMEM = pltpu.MemorySpace.VMEM

# ---------------- scaled-down GLM2-style config ----------------
HIDDEN = 128
N_HEADS = 4
HEAD_DIM = HIDDEN // N_HEADS          # 32
N_KV = 2                              # multi-query groups (ChatGLM2 uses 2)
KV_W = N_KV * HEAD_DIM                # 64
QKV_W = HIDDEN + 2 * KV_W             # 256  (lane-dense fused QKV width)
ROT = HEAD_DIM // 2                   # 16   rotary dims per head (partial rotary)
ROT_HALF = ROT // 2                   # 8    rotary frequencies
FFN = 256                             # 2*FFN = 512 lane-dense gate|up width
EPS = 1e-5
MXU_DTYPE = jnp.bfloat16              # MXU inputs; accumulation stays f32


# ---------------- rotary tables (mirrors the PyTorch wrapper's rotary_pos_emb) ----
def build_rope_tables(position_ids):
    """Per-column cos/sin over the fused QKV width.

    theta_j = 10000^(-2j/ROT), idx_theta = pos * theta (exactly the PyTorch wrapper).
    Columns in the V section or in the non-rotary half of each head get (1, 0) so the
    in-kernel rotation is a no-op there.
    """
    pos = position_ids.astype(jnp.float32)                                    # (S,)
    theta = 1.0 / (10000.0 ** (jnp.arange(0, ROT, 2, dtype=jnp.float32) / ROT))
    idx_theta = pos[:, None] * theta[None, :]                                 # (S, ROT_HALF)
    cos_p, sin_p = jnp.cos(idx_theta), jnp.sin(idx_theta)
    col = jnp.arange(QKV_W)
    within = col % HEAD_DIM
    pair = jnp.minimum(within // 2, ROT_HALF - 1)
    is_rot = (within < ROT) & (col < HIDDEN + KV_W)
    cos_full = jnp.where(is_rot[None, :], cos_p[:, pair], 1.0)
    sin_full = jnp.where(is_rot[None, :], sin_p[:, pair], 0.0)
    return cos_full.astype(jnp.float32), sin_full.astype(jnp.float32)


# ---------------- the fused GLM2 block kernel ----------------
def glm2_block_kernel(h_ref, cos_ref, sin_ref, past_k_ref, past_v_ref,
                      ln1_ref, wqkv_ref, bqkv_ref, wo_ref, ln2_ref,
                      w_in_ref, w_out_ref, lnf_ref,
                      h_out_ref, kv_out_ref, *, past_len, final_ln):
    f32 = jnp.float32
    S = h_ref.shape[0]
    T = past_len + S

    def rms(x, w):
        var = jnp.mean(x * x, axis=-1, keepdims=True)
        return x * jax.lax.rsqrt(var + EPS) * w

    h = h_ref[...].astype(f32)                                   # (S, H) residual stream

    # ---- input RMSNorm + single fused QKV projection (lane-dense, bf16 MXU) ----
    hn = rms(h, ln1_ref[...])
    qkv = jnp.dot(hn.astype(MXU_DTYPE), wqkv_ref[...],
                  preferred_element_type=f32) + bqkv_ref[...]    # (S, QKV_W) f32

    # ---- partial interleaved RoPE on the Q|K sections (V columns: cos=1, sin=0) ----
    # ChatGLM2 rotates (x[2j], x[2j+1]) pairs of the first ROT dims of each head.
    # partner(c) = c^1 is fetched with two static lane rotations (XLU slot, off VPU).
    col = jax.lax.broadcasted_iota(jnp.int32, (1, QKV_W), 1)
    is_even = (col % 2) == 0
    x_next = pltpu.roll(qkv, QKV_W - 1, 1)                       # x[c+1]
    x_prev = pltpu.roll(qkv, 1, 1)                               # x[c-1]
    partner = jnp.where(is_even, x_next, x_prev)
    sin_signed = jnp.where(is_even, -sin_ref[...], sin_ref[...])
    qkv = qkv * cos_ref[...] + partner * sin_signed

    q = qkv[:, :HIDDEN]                                          # (S, H)
    k_new = qkv[:, HIDDEN:HIDDEN + KV_W]                         # (S, KV_W)
    v_new = qkv[:, HIDDEN + KV_W:]                               # (S, KV_W)

    # ---- KV-cache append: presents = concat(past, new), written once, in-kernel ----
    kv_out_ref[0, :past_len, :] = past_k_ref[...]
    kv_out_ref[1, :past_len, :] = past_v_ref[...]
    kv_out_ref[0, past_len:, :] = k_new
    kv_out_ref[1, past_len:, :] = v_new

    # ---- multi-query attention, causal mask generated in-kernel (no HBM mask) ----
    k_tot = jnp.concatenate([past_k_ref[...], k_new], axis=0)    # (T, KV_W)
    v_tot = jnp.concatenate([past_v_ref[...], v_new], axis=0)    # (T, KV_W)
    qi = jax.lax.broadcasted_iota(jnp.int32, (S, T), 0)
    kj = jax.lax.broadcasted_iota(jnp.int32, (S, T), 1)
    bias = jnp.where(kj <= qi + past_len, 0.0, -1e9).astype(f32)
    scale = 1.0 / (HEAD_DIM ** 0.5)

    heads_per_group = N_HEADS // N_KV
    outs = []
    for hh in range(N_HEADS):                                    # static unroll (tiny)
        g = hh // heads_per_group
        q_h = q[:, hh * HEAD_DIM:(hh + 1) * HEAD_DIM].astype(MXU_DTYPE)       # (S, D)
        k_gt = k_tot[:, g * HEAD_DIM:(g + 1) * HEAD_DIM].T.astype(MXU_DTYPE)  # (D, T)
        v_g = v_tot[:, g * HEAD_DIM:(g + 1) * HEAD_DIM].astype(MXU_DTYPE)     # (T, D)
        s = jnp.dot(q_h, k_gt, preferred_element_type=f32) * scale + bias     # (S, T)
        m = jnp.max(s, axis=-1, keepdims=True)
        p = jnp.exp(s - m)
        l = jnp.sum(p, axis=-1, keepdims=True)
        o = jnp.dot(p.astype(MXU_DTYPE), v_g, preferred_element_type=f32) / l
        outs.append(o)
    attn = jnp.concatenate(outs, axis=-1)                        # (S, H) lane-dense

    # ---- output projection + residual, post-attn RMSNorm, SwiGLU MLP + residual ----
    h = h + jnp.dot(attn.astype(MXU_DTYPE), wo_ref[...], preferred_element_type=f32)
    hn2 = rms(h, ln2_ref[...])
    a = jnp.dot(hn2.astype(MXU_DTYPE), w_in_ref[...], preferred_element_type=f32)  # (S, 2*FFN)
    gate = a[:, :FFN]
    up = a[:, FFN:]
    act = (gate / (1.0 + jnp.exp(-gate))) * up                   # SiLU(gate) * up, f32 VPU/EUP
    h = h + jnp.dot(act.astype(MXU_DTYPE), w_out_ref[...], preferred_element_type=f32)

    # ---- optional final RMSNorm, last token only (== .view(-1,H)[-1]) ----
    if final_ln:
        h_out_ref[...] = rms(h[S - 1:S, :], lnf_ref[...]).astype(h_out_ref.dtype)
    else:
        h_out_ref[...] = h.astype(h_out_ref.dtype)


def glm2_block(params, hidden_states, attention_mask, position_ids, past_kv,
               *, final_layernorm=True):
    """One GLM2 decoder block as a single fused pallas_call."""
    del attention_mask  # causal-with-cache mask is generated inside the kernel (see TODO above)
    S = hidden_states.shape[0]
    past_len = past_kv.shape[1]
    total = past_len + S
    cos_t, sin_t = build_rope_tables(position_ids)
    past_k = past_kv[0].reshape(past_len, KV_W).astype(jnp.float32)
    past_v = past_kv[1].reshape(past_len, KV_W).astype(jnp.float32)

    out_rows = 1 if final_layernorm else S
    kernel = functools.partial(glm2_block_kernel, past_len=past_len,
                               final_ln=final_layernorm)
    # Grid-less call: every operand fits comfortably in VMEM on v5e/v6e/v7x.
    # (At real GLM2 sizes you would tile seq/FFN with a grid, mark an independent
    #  axis "parallel" for v7x's two TensorCores, and budget for 64 MiB VMEM.)
    h_out, kv_out = pl.pallas_call(
        kernel,
        out_shape=(jax.ShapeDtypeStruct((out_rows, HIDDEN), jnp.float32),
                   jax.ShapeDtypeStruct((2, total, KV_W), jnp.float32)),
        in_specs=[pl.BlockSpec(memory_space=VMEM)] * 13,
        out_specs=(pl.BlockSpec(memory_space=VMEM),
                   pl.BlockSpec(memory_space=VMEM)),
    )(hidden_states, cos_t, sin_t, past_k, past_v,
      params['ln1'], params['wqkv'], params['bqkv'], params['wo'], params['ln2'],
      params['w_in'], params['w_out'], params['ln_f'])

    presents = kv_out.reshape(2, total, N_KV, HEAD_DIM)   # contiguous reshape (free)
    return h_out, presents


# ---------------- pure-JAX reference (ground-truth ChatGLM2 block math) ----------------
def glm2_block_reference(params, hidden_states, position_ids, past_kv, *, final_layernorm):
    f32 = jnp.float32
    S = hidden_states.shape[0]
    past_len = past_kv.shape[1]
    T = past_len + S

    def rms(x, w):
        var = jnp.mean(x * x, axis=-1, keepdims=True)
        return x * jax.lax.rsqrt(var + EPS) * w

    h = hidden_states.astype(f32)
    hn = rms(h, params['ln1'])
    qkv = jnp.dot(hn.astype(MXU_DTYPE), params['wqkv'],
                  preferred_element_type=f32) + params['bqkv']

    # ground-truth interleaved partial rotary (explicit pair reshape formulation)
    pos = position_ids.astype(f32)
    theta = 1.0 / (10000.0 ** (jnp.arange(0, ROT, 2, dtype=f32) / ROT))
    idx_theta = pos[:, None] * theta[None, :]
    cos_p, sin_p = jnp.cos(idx_theta), jnp.sin(idx_theta)          # (S, ROT_HALF)
    nh_all = QKV_W // HEAD_DIM
    xh = qkv.reshape(S, nh_all, HEAD_DIM)
    xr = xh[..., :ROT].reshape(S, nh_all, ROT_HALF, 2)
    cb, sb = cos_p[:, None, :], sin_p[:, None, :]
    r0 = xr[..., 0] * cb - xr[..., 1] * sb
    r1 = xr[..., 1] * cb + xr[..., 0] * sb
    xr_out = jnp.stack([r0, r1], axis=-1).reshape(S, nh_all, ROT)
    rotated = jnp.concatenate([xr_out, xh[..., ROT:]], axis=-1).reshape(S, QKV_W)
    qkv = jnp.concatenate([rotated[:, :HIDDEN + KV_W], qkv[:, HIDDEN + KV_W:]], axis=1)

    q = qkv[:, :HIDDEN]
    k_new = qkv[:, HIDDEN:HIDDEN + KV_W]
    v_new = qkv[:, HIDDEN + KV_W:]
    past_k = past_kv[0].reshape(past_len, KV_W).astype(f32)
    past_v = past_kv[1].reshape(past_len, KV_W).astype(f32)
    k_tot = jnp.concatenate([past_k, k_new], axis=0)
    v_tot = jnp.concatenate([past_v, v_new], axis=0)

    qi = jnp.arange(S)[:, None]
    kj = jnp.arange(T)[None, :]
    bias = jnp.where(kj <= qi + past_len, 0.0, -1e9).astype(f32)
    scale = 1.0 / (HEAD_DIM ** 0.5)
    outs = []
    for hh in range(N_HEADS):
        g = hh // (N_HEADS // N_KV)
        q_h = q[:, hh * HEAD_DIM:(hh + 1) * HEAD_DIM].astype(MXU_DTYPE)
        k_gt = k_tot[:, g * HEAD_DIM:(g + 1) * HEAD_DIM].T.astype(MXU_DTYPE)
        v_g = v_tot[:, g * HEAD_DIM:(g + 1) * HEAD_DIM].astype(MXU_DTYPE)
        s = jnp.dot(q_h, k_gt, preferred_element_type=f32) * scale + bias
        m = jnp.max(s, axis=-1, keepdims=True)
        p = jnp.exp(s - m)
        l = jnp.sum(p, axis=-1, keepdims=True)
        outs.append(jnp.dot(p.astype(MXU_DTYPE), v_g, preferred_element_type=f32) / l)
    attn = jnp.concatenate(outs, axis=-1)

    h = h + jnp.dot(attn.astype(MXU_DTYPE), params['wo'], preferred_element_type=f32)
    hn2 = rms(h, params['ln2'])
    a = jnp.dot(hn2.astype(MXU_DTYPE), params['w_in'], preferred_element_type=f32)
    gate, up = a[:, :FFN], a[:, FFN:]
    act = (gate / (1.0 + jnp.exp(-gate))) * up
    h = h + jnp.dot(act.astype(MXU_DTYPE), params['w_out'], preferred_element_type=f32)

    presents = jnp.stack([k_tot, v_tot]).reshape(2, T, N_KV, HEAD_DIM)
    if final_layernorm:
        h = rms(h[-1:, :], params['ln_f'])
    return h, presents


# ---------------- parameters ----------------
def make_params(key):
    ks = jax.random.split(key, 8)

    def w(k, shape, scale=0.02):
        return (scale * jax.random.normal(k, shape, dtype=jnp.float32)).astype(MXU_DTYPE)

    def g(k, shape):
        return 1.0 + 0.1 * jax.random.normal(k, shape, dtype=jnp.float32)

    return {
        'ln1':   g(ks[0], (1, HIDDEN)),
        'ln2':   g(ks[1], (1, HIDDEN)),
        'ln_f':  g(ks[2], (1, HIDDEN)),
        'wqkv':  w(ks[3], (HIDDEN, QKV_W)),                       # fused Q|K|V
        'bqkv':  0.02 * jax.random.normal(ks[4], (1, QKV_W), dtype=jnp.float32),
        'wo':    w(ks[5], (HIDDEN, HIDDEN)),                      # attention dense (no bias)
        'w_in':  w(ks[6], (HIDDEN, 2 * FFN)),                     # fused gate|up (no bias)
        'w_out': w(ks[7], (FFN, HIDDEN)),                         # 4h -> h      (no bias)
    }


if __name__ == "__main__":
    key = jax.random.PRNGKey(0)
    kp, kh, kkv = jax.random.split(key, 3)
    SEQ, PAST = 8, 8

    params = make_params(kp)
    hidden_states = jax.random.normal(kh, (SEQ, HIDDEN), dtype=jnp.float32)
    position_ids = PAST + jnp.arange(SEQ, dtype=jnp.int32)
    past_kv = 0.5 * jax.random.normal(kkv, (2, PAST, N_KV, HEAD_DIM), dtype=jnp.float32)
    attention_mask = None   # standard causal-with-cache mask, generated in-kernel

    for final in (True, False):   # final block (with final_layernorm) and inner block
        h_out, presents = glm2_block(params, hidden_states, attention_mask,
                                     position_ids, past_kv, final_layernorm=final)
        jax.block_until_ready((h_out, presents))

        h_ref, p_ref = glm2_block_reference(params, hidden_states, position_ids,
                                            past_kv, final_layernorm=final)
        assert h_out.shape == ((1, HIDDEN) if final else (SEQ, HIDDEN))
        assert presents.shape == (2, PAST + SEQ, N_KV, HEAD_DIM)
        np.testing.assert_allclose(np.asarray(h_out), np.asarray(h_ref),
                                   atol=1e-3, rtol=1e-3)
        np.testing.assert_allclose(np.asarray(presents), np.asarray(p_ref),
                                   atol=1e-3, rtol=1e-3)

    print("KERNEL_OK")
</pallas_src>

<mosaic_0001>
module attributes {stable_mosaic.version = 11 : i64} {
  func.func @glm2_block_kernel(%arg0: memref<8x128xf32, #tpu.memory_space<vmem>>, %arg1: memref<8x256xf32, #tpu.memory_space<vmem>>, %arg2: memref<8x256xf32, #tpu.memory_space<vmem>>, %arg3: memref<8x64xf32, #tpu.memory_space<vmem>>, %arg4: memref<8x64xf32, #tpu.memory_space<vmem>>, %arg5: memref<1x128xf32, #tpu.memory_space<vmem>>, %arg6: memref<128x256xbf16, #tpu.memory_space<vmem>>, %arg7: memref<1x256xf32, #tpu.memory_space<vmem>>, %arg8: memref<128x128xbf16, #tpu.memory_space<vmem>>, %arg9: memref<1x128xf32, #tpu.memory_space<vmem>>, %arg10: memref<128x512xbf16, #tpu.memory_space<vmem>>, %arg11: memref<256x128xbf16, #tpu.memory_space<vmem>>, %arg12: memref<1x128xf32, #tpu.memory_space<vmem>>, %arg13: memref<1x128xf32, #tpu.memory_space<vmem>>, %arg14: memref<2x16x64xf32, #tpu.memory_space<vmem>>) attributes {dimension_semantics = [], scalar_prefetch = 0 : i64, scratch_operands = 0 : i64, tpu.core_type = #tpu.core_type<tc>} {
    %c0 = arith.constant 0 : index
    %c0_0 = arith.constant 0 : index
    %0 = vector.load %arg0[%c0, %c0_0] : memref<8x128xf32, #tpu.memory_space<vmem>>, vector<8x128xf32>
    %c0_1 = arith.constant 0 : index
    %c0_2 = arith.constant 0 : index
    %1 = vector.load %arg5[%c0_1, %c0_2] : memref<1x128xf32, #tpu.memory_space<vmem>>, vector<1x128xf32>
    %2 = arith.mulf %0, %0 : vector<8x128xf32>
    %cst = arith.constant dense<0.000000e+00> : vector<8xf32>
    %3 = vector.multi_reduction <add>, %2, %cst [1] : vector<8x128xf32> to vector<8xf32>
    %4 = vector.shape_cast %3 : vector<8xf32> to vector<8x1xf32>
    %cst_3 = arith.constant 1.280000e+02 : f32
    %5 = vector.broadcast %cst_3 : f32 to vector<8x1xf32>
    %6 = arith.divf %4, %5 : vector<8x1xf32>
    %cst_4 = arith.constant 9.99999974E-6 : f32
    %7 = vector.broadcast %cst_4 : f32 to vector<8x1xf32>
    %8 = arith.addf %6, %7 : vector<8x1xf32>
    %9 = math.rsqrt %8 : vector<8x1xf32>
    %10 = vector.broadcast %9 : vector<8x1xf32> to vector<8x128xf32>
    %11 = arith.mulf %0, %10 : vector<8x128xf32>
    %12 = vector.broadcast %1 : vector<1x128xf32> to vector<8x128xf32>
    %13 = arith.mulf %11, %12 : vector<8x128xf32>
    %14 = arith.truncf %13 : vector<8x128xf32> to vector<8x128xbf16>
    %c0_5 = arith.constant 0 : index
    %c0_6 = arith.constant 0 : index
    %15 = vector.load %arg6[%c0_5, %c0_6] : memref<128x256xbf16, #tpu.memory_space<vmem>>, vector<128x256xbf16>
    %cst_7 = arith.constant dense<0.000000e+00> : vector<8x256xf32>
    %16 = tpu.matmul %14, %15, %cst_7 {dimension_numbers = #tpu.dot_dimension_numbers<[1], [0], [0], [1], [0, 0, 1, 1], [], []>} : vector<8x128xbf16>, vector<128x256xbf16>, vector<8x256xf32> -> vector<8x256xf32>
    %c0_8 = arith.constant 0 : index
    %c0_9 = arith.constant 0 : index
    %17 = vector.load %arg7[%c0_8, %c0_9] : memref<1x256xf32, #tpu.memory_space<vmem>>, vector<1x256xf32>
    %18 = vector.broadcast %17 : vector<1x256xf32> to vector<8x256xf32>
    %19 = arith.addf %16, %18 : vector<8x256xf32>
    %20 = tpu.iota {dimensions = array<i32: 1>} : vector<1x256xi32>
    %c2_i32 = arith.constant 2 : i32
    %c0_i32 = arith.constant 0 : i32
    %21 = arith.cmpi eq, %c2_i32, %c0_i32 : i32
    %c1_i32 = arith.constant 1 : i32
    %22 = arith.select %21, %c1_i32, %c2_i32 : i32
    %23 = vector.broadcast %22 : i32 to vector<1x256xi32>
    %24 = arith.remsi %20, %23 : vector<1x256xi32>
    %c0_i32_10 = arith.constant 0 : i32
    %25 = vector.broadcast %c0_i32_10 : i32 to vector<1x256xi32>
    %26 = arith.cmpi ne, %24, %25 : vector<1x256xi32>
    %c0_i32_11 = arith.constant 0 : i32
    %27 = vector.broadcast %c0_i32_11 : i32 to vector<1x256xi32>
    %28 = arith.cmpi slt, %24, %27 : vector<1x256xi32>
    %c0_i32_12 = arith.constant 0 : i32
    %29 = arith.cmpi slt, %22, %c0_i32_12 : i32
    %30 = vector.broadcast %29 : i1 to vector<1x256xi1>
    %31 = vector.broadcast %30 : vector<1x256xi1> to vector<1x256xi1>
    %32 = arith.xori %28, %31 : vector<1x256xi1>
    %33 = arith.andi %32, %26 : vector<1x256xi1>
    %34 = vector.broadcast %22 : i32 to vector<1x256xi32>
    %35 = arith.addi %24, %34 : vector<1x256xi32>
    %36 = arith.select %33, %35, %24 : vector<1x256xi1>, vector<1x256xi32>
    %c0_i32_13 = arith.constant 0 : i32
    %37 = vector.broadcast %c0_i32_13 : i32 to vector<1x256xi32>
    %38 = arith.cmpi eq, %36, %37 : vector<1x256xi32>
    %c255_i32 = arith.constant 255 : i32
    %39 = tpu.dynamic_rotate %19 by %c255_i32 dim 1 : vector<8x256xf32>, i32 -> vector<8x256xf32>
    %c1_i32_14 = arith.constant 1 : i32
    %40 = tpu.dynamic_rotate %19 by %c1_i32_14 dim 1 : vector<8x256xf32>, i32 -> vector<8x256xf32>
    %41 = vector.shape_cast %38 : vector<1x256xi1> to vector<1x256xi1>
    %42 = vector.broadcast %41 : vector<1x256xi1> to vector<8x256xi1>
    %43 = arith.select %42, %39, %40 : vector<8x256xi1>, vector<8x256xf32>
    %c0_15 = arith.constant 0 : index
    %c0_16 = arith.constant 0 : index
    %44 = vector.load %arg2[%c0_15, %c0_16] : memref<8x256xf32, #tpu.memory_space<vmem>>, vector<8x256xf32>
    %cst_17 = arith.constant 0.000000e+00 : f32
    %45 = vector.broadcast %cst_17 : f32 to vector<8x256xf32>
    %46 = arith.subf %45, %44 : vector<8x256xf32>
    %c0_18 = arith.constant 0 : index
    %c0_19 = arith.constant 0 : index
    %47 = vector.load %arg2[%c0_18, %c0_19] : memref<8x256xf32, #tpu.memory_space<vmem>>, vector<8x256xf32>
    %48 = vector.shape_cast %38 : vector<1x256xi1> to vector<1x256xi1>
    %49 = vector.broadcast %48 : vector<1x256xi1> to vector<8x256xi1>
    %50 = arith.select %49, %46, %47 : vector<8x256xi1>, vector<8x256xf32>
    %c0_20 = arith.constant 0 : index
    %c0_21 = arith.constant 0 : index
    %51 = vector.load %arg1[%c0_20, %c0_21] : memref<8x256xf32, #tpu.memory_space<vmem>>, vector<8x256xf32>
    %52 = arith.mulf %19, %51 : vector<8x256xf32>
    %53 = arith.mulf %43, %50 : vector<8x256xf32>
    %54 = arith.addf %52, %53 : vector<8x256xf32>
    %55 = vector.extract_strided_slice %54 {offsets = [0, 0], sizes = [8, 128], strides = [1, 1]} : vector<8x256xf32> to vector<8x128xf32>
    %56 = vector.extract_strided_slice %54 {offsets = [0, 128], sizes = [8, 64], strides = [1, 1]} : vector<8x256xf32> to vector<8x64xf32>
    %57 = vector.extract_strided_slice %54 {offsets = [0, 192], sizes = [8, 64], strides = [1, 1]} : vector<8x256xf32> to vector<8x64xf32>
    %c0_22 = arith.constant 0 : index
    %c0_23 = arith.constant 0 : index
    %58 = vector.load %arg3[%c0_22, %c0_23] : memref<8x64xf32, #tpu.memory_space<vmem>>, vector<8x64xf32>
    %c0_24 = arith.constant 0 : index
    %c0_25 = arith.constant 0 : index
    %c0_26 = arith.constant 0 : index
    %59 = vector.load %arg14[%c0_24, %c0_25, %c0_26] : memref<2x16x64xf32, #tpu.memory_space<vmem>>, vector<1x8x64xf32>
    %60 = vector.shape_cast %59 : vector<1x8x64xf32> to vector<8x64xf32>
    %61 = vector.shape_cast %58 : vector<8x64xf32> to vector<1x8x64xf32>
    tpu.vector_store %arg14[%c0_24, %c0_25, %c0_26], %61 {strides = array<i32>} : memref<2x16x64xf32, #tpu.memory_space<vmem>>, vector<1x8x64xf32>,
    %c0_27 = arith.constant 0 : index
    %c0_28 = arith.constant 0 : index
    %62 = vector.load %arg4[%c0_27, %c0_28] : memref<8x64xf32, #tpu.memory_space<vmem>>, vector<8x64xf32>
    %c1 = arith.constant 1 : index
    %c0_29 = arith.constant 0 : index
    %c0_30 = arith.constant 0 : index
    %63 = vector.load %arg14[%c1, %c0_29, %c0_30] : memref<2x16x64xf32, #tpu.memory_space<vmem>>, vector<1x8x64xf32>
    %64 = vector.shape_cast %63 : vector<1x8x64xf32> to vector<8x64xf32>
    %65 = vector.shape_cast %62 : vector<8x64xf32> to vector<1x8x64xf32>
    tpu.vector_store %arg14[%c1, %c0_29, %c0_30], %65 {strides = array<i32>} : memref<2x16x64xf32, #tpu.memory_space<vmem>>, vector<1x8x64xf32>,
    %c0_31 = arith.constant 0 : index
    %c8 = arith.constant 8 : index
    %c0_32 = arith.constant 0 : index
    %66 = vector.load %arg14[%c0_31, %c8, %c0_32] : memref<2x16x64xf32, #tpu.memory_space<vmem>>, vector<1x8x64xf32>
    %67 = vector.shape_cast %66 : vector<1x8x64xf32> to vector<8x64xf32>
    %68 = vector.shape_cast %56 : vector<8x64xf32> to vector<1x8x64xf32>
    tpu.vector_store %arg14[%c0_31, %c8, %c0_32], %68 {strides = array<i32>} : memref<2x16x64xf32, #tpu.memory_space<vmem>>, vector<1x8x64xf32>,
    %c1_33 = arith.constant 1 : index
    %c8_34 = arith.constant 8 : index
    %c0_35 = arith.constant 0 : index
    %69 = vector.load %arg14[%c1_33, %c8_34, %c0_35] : memref<2x16x64xf32, #tpu.memory_space<vmem>>, vector<1x8x64xf32>
    %70 = vector.shape_cast %69 : vector<1x8x64xf32> to vector<8x64xf32>
    %71 = vector.shape_cast %57 : vector<8x64xf32> to vector<1x8x64xf32>
    tpu.vector_store %arg14[%c1_33, %c8_34, %c0_35], %71 {strides = array<i32>} : memref<2x16x64xf32, #tpu.memory_space<vmem>>, vector<1x8x64xf32>,
    %c0_36 = arith.constant 0 : index
    %c0_37 = arith.constant 0 : index
    %72 = vector.load %arg3[%c0_36, %c0_37] : memref<8x64xf32, #tpu.memory_space<vmem>>, vector<8x64xf32>
    %73 = tpu.concatenate %72, %56 in 0 : vector<8x64xf32>, vector<8x64xf32> -> vector<16x64xf32>
    %c0_38 = arith.constant 0 : index
    %c0_39 = arith.constant 0 : index
    %74 = vector.load %arg4[%c0_38, %c0_39] : memref<8x64xf32, #tpu.memory_space<vmem>>, vector<8x64xf32>
    %75 = tpu.concatenate %74, %57 in 0 : vector<8x64xf32>, vector<8x64xf32> -> vector<16x64xf32>
    %76 = tpu.iota {dimensions = array<i32: 0>} : vector<8x16xi32>
    %77 = tpu.iota {dimensions = array<i32: 1>} : vector<8x16xi32>
    %c8_i32 = arith.constant 8 : i32
    %78 = vector.broadcast %c8_i32 : i32 to vector<8x16xi32>
    %79 = arith.addi %76, %78 : vector<8x16xi32>
    %80 = arith.cmpi sle, %77, %79 : vector<8x16xi32>
    %cst_40 = arith.constant 0.000000e+00 : f32
    %cst_41 = arith.constant -1.000000e+09 : f32
    %81 = vector.broadcast %cst_40 : f32 to vector<8x16xf32>
    %82 = vector.broadcast %cst_41 : f32 to vector<8x16xf32>
    %83 = arith.select %80, %81, %82 : vector<8x16xi1>, vector<8x16xf32>
    %84 = vector.extract_strided_slice %55 {offsets = [0, 0], sizes = [8, 32], strides = [1, 1]} : vector<8x128xf32> to vector<8x32xf32>
    %85 = arith.truncf %84 : vector<8x32xf32> to vector<8x32xbf16>
    %86 = vector.extract_strided_slice %73 {offsets = [0, 0], sizes = [16, 32], strides = [1, 1]} : vector<16x64xf32> to vector<16x32xf32>
    %87 = tpu.transpose %86, [1, 0] : vector<16x32xf32> -> vector<32x16xf32>
    %88 = arith.truncf %87 : vector<32x16xf32> to vector<32x16xbf16>
    %89 = vector.extract_strided_slice %75 {offsets = [0, 0], sizes = [16, 32], strides = [1, 1]} : vector<16x64xf32> to vector<16x32xf32>
    %90 = arith.truncf %89 : vector<16x32xf32> to vector<16x32xbf16>
    %cst_42 = arith.constant dense<0.000000e+00> : vector<8x16xf32>
    %91 = tpu.matmul %85, %88, %cst_42 {dimension_numbers = #tpu.dot_dimension_numbers<[1], [0], [0], [1], [0, 0, 1, 1], [], []>} : vector<8x32xbf16>, vector<32x16xbf16>, vector<8x16xf32> -> vector<8x16xf32>
    %cst_43 = arith.constant 0.176776692 : f32
    %92 = vector.broadcast %cst_43 : f32 to vector<8x16xf32>
    %93 = arith.mulf %91, %92 : vector<8x16xf32>
    %94 = arith.addf %93, %83 : vector<8x16xf32>
    %cst_44 = arith.constant dense<0xFF800000> : vector<8xf32>
    %95 = vector.multi_reduction <maximumf>, %94, %cst_44 [1] : vector<8x16xf32> to vector<8xf32>
    %96 = vector.shape_cast %95 : vector<8xf32> to vector<8x1xf32>
    %97 = vector.broadcast %96 : vector<8x1xf32> to vector<8x16xf32>
    %98 = arith.subf %94, %97 : vector<8x16xf32>
    %99 = math.exp %98 : vector<8x16xf32>
    %cst_45 = arith.constant dense<0.000000e+00> : vector<8xf32>
    %100 = vector.multi_reduction <add>, %99, %cst_45 [1] : vector<8x16xf32> to vector<8xf32>
    %101 = vector.shape_cast %100 : vector<8xf32> to vector<8x1xf32>
    %102 = arith.truncf %99 : vector<8x16xf32> to vector<8x16xbf16>
    %cst_46 = arith.constant dense<0.000000e+00> : vector<8x32xf32>
    %103 = tpu.matmul %102, %90, %cst_46 {dimension_numbers = #tpu.dot_dimension_numbers<[1], [0], [0], [1], [0, 0, 1, 1], [], []>} : vector<8x16xbf16>, vector<16x32xbf16>, vector<8x32xf32> -> vector<8x32xf32>
    %104 = vector.broadcast %101 : vector<8x1xf32> to vector<8x32xf32>
    %105 = arith.divf %103, %104 : vector<8x32xf32>
    %106 = vector.extract_strided_slice %55 {offsets = [0, 32], sizes = [8, 32], strides = [1, 1]} : vector<8x128xf32> to vector<8x32xf32>
    %107 = arith.truncf %106 : vector<8x32xf32> to vector<8x32xbf16>
    %108 = vector.extract_strided_slice %73 {offsets = [0, 0], sizes = [16, 32], strides = [1, 1]} : vector<16x64xf32> to vector<16x32xf32>
    %109 = tpu.transpose %108, [1, 0] : vector<16x32xf32> -> vector<32x16xf32>
    %110 = arith.truncf %109 : vector<32x16xf32> to vector<32x16xbf16>
    %111 = vector.extract_strided_slice %75 {offsets = [0, 0], sizes = [16, 32], strides = [1, 1]} : vector<16x64xf32> to vector<16x32xf32>
    %112 = arith.truncf %111 : vector<16x32xf32> to vector<16x32xbf16>
    %cst_47 = arith.constant dense<0.000000e+00> : vector<8x16xf32>
    %113 = tpu.matmul %107, %110, %cst_47 {dimension_numbers = #tpu.dot_dimension_numbers<[1], [0], [0], [1], [0, 0, 1, 1], [], []>} : vector<8x32xbf16>, vector<32x16xbf16>, vector<8x16xf32> -> vector<8x16xf32>
    %cst_48 = arith.constant 0.176776692 : f32
    %114 = vector.broadcast %cst_48 : f32 to vector<8x16xf32>
    %115 = arith.mulf %113, %114 : vector<8x16xf32>
    %116 = arith.addf %115, %83 : vector<8x16xf32>
    %cst_49 = arith.constant dense<0xFF800000> : vector<8xf32>
    %117 = vector.multi_reduction <maximumf>, %116, %cst_49 [1] : vector<8x16xf32> to vector<8xf32>
    %118 = vector.shape_cast %117 : vector<8xf32> to vector<8x1xf32>
    %119 = vector.broadcast %118 : vector<8x1xf32> to vector<8x16xf32>
    %120 = arith.subf %116, %119 : vector<8x16xf32>
    %121 = math.exp %120 : vector<8x16xf32>
    %cst_50 = arith.constant dense<0.000000e+00> : vector<8xf32>
    %122 = vector.multi_reduction <add>, %121, %cst_50 [1] : vector<8x16xf32> to vector<8xf32>
    %123 = vector.shape_cast %122 : vector<8xf32> to vector<8x1xf32>
    %124 = arith.truncf %121 : vector<8x16xf32> to vector<8x16xbf16>
    %cst_51 = arith.constant dense<0.000000e+00> : vector<8x32xf32>
    %125 = tpu.matmul %124, %112, %cst_51 {dimension_numbers = #tpu.dot_dimension_numbers<[1], [0], [0], [1], [0, 0, 1, 1], [], []>} : vector<8x16xbf16>, vector<16x32xbf16>, vector<8x32xf32> -> vector<8x32xf32>
    %126 = vector.broadcast %123 : vector<8x1xf32> to vector<8x32xf32>
    %127 = arith.divf %125, %126 : vector<8x32xf32>
    %128 = vector.extract_strided_slice %55 {offsets = [0, 64], sizes = [8, 32], strides = [1, 1]} : vector<8x128xf32> to vector<8x32xf32>
    %129 = arith.truncf %128 : vector<8x32xf32> to vector<8x32xbf16>
    %130 = vector.extract_strided_slice %73 {offsets = [0, 32], sizes = [16, 32], strides = [1, 1]} : vector<16x64xf32> to vector<16x32xf32>
    %131 = tpu.transpose %130, [1, 0] : vector<16x32xf32> -> vector<32x16xf32>
    %132 = arith.truncf %131 : vector<32x16xf32> to vector<32x16xbf16>
    %133 = vector.extract_strided_slice %75 {offsets = [0, 32], sizes = [16, 32], strides = [1, 1]} : vector<16x64xf32> to vector<16x32xf32>
    %134 = arith.truncf %133 : vector<16x32xf32> to vector<16x32xbf16>
    %cst_52 = arith.constant dense<0.000000e+00> : vector<8x16xf32>
    %135 = tpu.matmul %129, %132, %cst_52 {dimension_numbers = #tpu.dot_dimension_numbers<[1], [0], [0], [1], [0, 0, 1, 1], [], []>} : vector<8x32xbf16>, vector<32x16xbf16>, vector<8x16xf32> -> vector<8x16xf32>
    %cst_53 = arith.constant 0.176776692 : f32
    %136 = vector.broadcast %cst_53 : f32 to vector<8x16xf32>
    %137 = arith.mulf %135, %136 : vector<8x16xf32>
    %138 = arith.addf %137, %83 : vector<8x16xf32>
    %cst_54 = arith.constant dense<0xFF800000> : vector<8xf32>
    %139 = vector.multi_reduction <maximumf>, %138, %cst_54 [1] : vector<8x16xf32> to vector<8xf32>
    %140 = vector.shape_cast %139 : vector<8xf32> to vector<8x1xf32>
    %141 = vector.broadcast %140 : vector<8x1xf32> to vector<8x16xf32>
    %142 = arith.subf %138, %141 : vector<8x16xf32>
    %143 = math.exp %142 : vector<8x16xf32>
    %cst_55 = arith.constant dense<0.000000e+00> : vector<8xf32>
    %144 = vector.multi_reduction <add>, %143, %cst_55 [1] : vector<8x16xf32> to vector<8xf32>
    %145 = vector.shape_cast %144 : vector<8xf32> to vector<8x1xf32>
    %146 = arith.truncf %143 : vector<8x16xf32> to vector<8x16xbf16>
    %cst_56 = arith.constant dense<0.000000e+00> : vector<8x32xf32>
    %147 = tpu.matmul %146, %134, %cst_56 {dimension_numbers = #tpu.dot_dimension_numbers<[1], [0], [0], [1], [0, 0, 1, 1], [], []>} : vector<8x16xbf16>, vector<16x32xbf16>, vector<8x32xf32> -> vector<8x32xf32>
    %148 = vector.broadcast %145 : vector<8x1xf32> to vector<8x32xf32>
    %149 = arith.divf %147, %148 : vector<8x32xf32>
    %150 = vector.extract_strided_slice %55 {offsets = [0, 96], sizes = [8, 32], strides = [1, 1]} : vector<8x128xf32> to vector<8x32xf32>
    %151 = arith.truncf %150 : vector<8x32xf32> to vector<8x32xbf16>
    %152 = vector.extract_strided_slice %73 {offsets = [0, 32], sizes = [16, 32], strides = [1, 1]} : vector<16x64xf32> to vector<16x32xf32>
    %153 = tpu.transpose %152, [1, 0] : vector<16x32xf32> -> vector<32x16xf32>
    %154 = arith.truncf %153 : vector<32x16xf32> to vector<32x16xbf16>
    %155 = vector.extract_strided_slice %75 {offsets = [0, 32], sizes = [16, 32], strides = [1, 1]} : vector<16x64xf32> to vector<16x32xf32>
    %156 = arith.truncf %155 : vector<16x32xf32> to vector<16x32xbf16>
    %cst_57 = arith.constant dense<0.000000e+00> : vector<8x16xf32>
    %157 = tpu.matmul %151, %154, %cst_57 {dimension_numbers = #tpu.dot_dimension_numbers<[1], [0], [0], [1], [0, 0, 1, 1], [], []>} : vector<8x32xbf16>, vector<32x16xbf16>, vector<8x16xf32> -> vector<8x16xf32>
    %cst_58 = arith.constant 0.176776692 : f32
    %158 = vector.broadcast %cst_58 : f32 to vector<8x16xf32>
    %159 = arith.mulf %157, %158 : vector<8x16xf32>
    %160 = arith.addf %159, %83 : vector<8x16xf32>
    %cst_59 = arith.constant dense<0xFF800000> : vector<8xf32>
    %161 = vector.multi_reduction <maximumf>, %160, %cst_59 [1] : vector<8x16xf32> to vector<8xf32>
    %162 = vector.shape_cast %161 : vector<8xf32> to vector<8x1xf32>
    %163 = vector.broadcast %162 : vector<8x1xf32> to vector<8x16xf32>
    %164 = arith.subf %160, %163 : vector<8x16xf32>
    %165 = math.exp %164 : vector<8x16xf32>
    %cst_60 = arith.constant dense<0.000000e+00> : vector<8xf32>
    %166 = vector.multi_reduction <add>, %165, %cst_60 [1] : vector<8x16xf32> to vector<8xf32>
    %167 = vector.shape_cast %166 : vector<8xf32> to vector<8x1xf32>
    %168 = arith.truncf %165 : vector<8x16xf32> to vector<8x16xbf16>
    %cst_61 = arith.constant dense<0.000000e+00> : vector<8x32xf32>
    %169 = tpu.matmul %168, %156, %cst_61 {dimension_numbers = #tpu.dot_dimension_numbers<[1], [0], [0], [1], [0, 0, 1, 1], [], []>} : vector<8x16xbf16>, vector<16x32xbf16>, vector<8x32xf32> -> vector<8x32xf32>
    %170 = vector.broadcast %167 : vector<8x1xf32> to vector<8x32xf32>
    %171 = arith.divf %169, %170 : vector<8x32xf32>
    %172 = tpu.concatenate %105, %127, %149, %171 in 1 : vector<8x32xf32>, vector<8x32xf32>, vector<8x32xf32>, vector<8x32xf32> -> vector<8x128xf32>
    %173 = arith.truncf %172 : vector<8x128xf32> to vector<8x128xbf16>
    %c0_62 = arith.constant 0 : index
    %c0_63 = arith.constant 0 : index
    %174 = vector.load %arg8[%c0_62, %c0_63] : memref<128x128xbf16, #tpu.memory_space<vmem>>, vector<128x128xbf16>
    %cst_64 = arith.constant dense<0.000000e+00> : vector<8x128xf32>
    %175 = tpu.matmul %173, %174, %cst_64 {dimension_numbers = #tpu.dot_dimension_numbers<[1], [0], [0], [1], [0, 0, 1, 1], [], []>} : vector<8x128xbf16>, vector<128x128xbf16>, vector<8x128xf32> -> vector<8x128xf32>
    %176 = arith.addf %0, %175 : vector<8x128xf32>
    %c0_65 = arith.constant 0 : index
    %c0_66 = arith.constant 0 : index
    %177 = vector.load %arg9[%c0_65, %c0_66] : memref<1x128xf32, #tpu.memory_space<vmem>>, vector<1x128xf32>
    %178 = arith.mulf %176, %176 : vector<8x128xf32>
    %cst_67 = arith.constant dense<0.000000e+00> : vector<8xf32>
    %179 = vector.multi_reduction <add>, %178, %cst_67 [1] : vector<8x128xf32> to vector<8xf32>
    %180 = vector.shape_cast %179 : vector<8xf32> to vector<8x1xf32>
    %cst_68 = arith.constant 1.280000e+02 : f32
    %181 = vector.broadcast %cst_68 : f32 to vector<8x1xf32>
    %182 = arith.divf %180, %181 : vector<8x1xf32>
    %cst_69 = arith.constant 9.99999974E-6 : f32
    %183 = vector.broadcast %cst_69 : f32 to vector<8x1xf32>
    %184 = arith.addf %182, %183 : vector<8x1xf32>
    %185 = math.rsqrt %184 : vector<8x1xf32>
    %186 = vector.broadcast %185 : vector<8x1xf32> to vector<8x128xf32>
    %187 = arith.mulf %176, %186 : vector<8x128xf32>
    %188 = vector.broadcast %177 : vector<1x128xf32> to vector<8x128xf32>
    %189 = arith.mulf %187, %188 : vector<8x128xf32>
    %190 = arith.truncf %189 : vector<8x128xf32> to vector<8x128xbf16>
    %c0_70 = arith.constant 0 : index
    %c0_71 = arith.constant 0 : index
    %191 = vector.load %arg10[%c0_70, %c0_71] : memref<128x512xbf16, #tpu.memory_space<vmem>>, vector<128x512xbf16>
    %cst_72 = arith.constant dense<0.000000e+00> : vector<8x512xf32>
    %192 = tpu.matmul %190, %191, %cst_72 {dimension_numbers = #tpu.dot_dimension_numbers<[1], [0], [0], [1], [0, 0, 1, 1], [], []>} : vector<8x128xbf16>, vector<128x512xbf16>, vector<8x512xf32> -> vector<8x512xf32>
    %193 = vector.extract_strided_slice %192 {offsets = [0, 0], sizes = [8, 256], strides = [1, 1]} : vector<8x512xf32> to vector<8x256xf32>
    %194 = vector.extract_strided_slice %192 {offsets = [0, 256], sizes = [8, 256], strides = [1, 1]} : vector<8x512xf32> to vector<8x256xf32>
    %cst_73 = arith.constant 0.000000e+00 : f32
    %195 = vector.broadcast %cst_73 : f32 to vector<8x256xf32>
    %196 = arith.subf %195, %193 : vector<8x256xf32>
    %197 = math.exp %196 : vector<8x256xf32>
    %cst_74 = arith.constant 1.000000e+00 : f32
    %198 = vector.broadcast %cst_74 : f32 to vector<8x256xf32>
    %199 = arith.addf %198, %197 : vector<8x256xf32>
    %200 = arith.divf %193, %199 : vector<8x256xf32>
    %201 = arith.mulf %200, %194 : vector<8x256xf32>
    %202 = arith.truncf %201 : vector<8x256xf32> to vector<8x256xbf16>
    %c0_75 = arith.constant 0 : index
    %c0_76 = arith.constant 0 : index
    %203 = vector.load %arg11[%c0_75, %c0_76] : memref<256x128xbf16, #tpu.memory_space<vmem>>, vector<256x128xbf16>
    %cst_77 = arith.constant dense<0.000000e+00> : vector<8x128xf32>
    %204 = tpu.matmul %202, %203, %cst_77 {dimension_numbers = #tpu.dot_dimension_numbers<[1], [0], [0], [1], [0, 0, 1, 1], [], []>} : vector<8x256xbf16>, vector<256x128xbf16>, vector<8x128xf32> -> vector<8x128xf32>
    %205 = arith.addf %176, %204 : vector<8x128xf32>
    %206 = vector.extract_strided_slice %205 {offsets = [7, 0], sizes = [1, 128], strides = [1, 1]} : vector<8x128xf32> to vector<1x128xf32>
    %c0_78 = arith.constant 0 : index
    %c0_79 = arith.constant 0 : index
    %207 = vector.load %arg12[%c0_78, %c0_79] : memref<1x128xf32, #tpu.memory_space<vmem>>, vector<1x128xf32>
    %208 = arith.mulf %206, %206 : vector<1x128xf32>
    %cst_80 = arith.constant dense<0.000000e+00> : vector<1xf32>
    %209 = vector.multi_reduction <add>, %208, %cst_80 [1] : vector<1x128xf32> to vector<1xf32>
    %210 = vector.shape_cast %209 : vector<1xf32> to vector<1x1xf32>
    %cst_81 = arith.constant 1.280000e+02 : f32
    %211 = vector.broadcast %cst_81 : f32 to vector<1x1xf32>
    %212 = arith.divf %210, %211 : vector<1x1xf32>
    %cst_82 = arith.constant 9.99999974E-6 : f32
    %213 = vector.broadcast %cst_82 : f32 to vector<1x1xf32>
    %214 = arith.addf %212, %213 : vector<1x1xf32>
    %215 = math.rsqrt %214 : vector<1x1xf32>
    %216 = vector.broadcast %215 : vector<1x1xf32> to vector<1x128xf32>
    %217 = arith.mulf %206, %216 : vector<1x128xf32>
    %218 = arith.mulf %217, %207 : vector<1x128xf32>
    %c0_83 = arith.constant 0 : index
    %c0_84 = arith.constant 0 : index
    %219 = vector.load %arg13[%c0_83, %c0_84] : memref<1x128xf32, #tpu.memory_space<vmem>>, vector<1x128xf32>
    tpu.vector_store %arg13[%c0_83, %c0_84], %218 {strides = array<i32>} : memref<1x128xf32, #tpu.memory_space<vmem>>, vector<1x128xf32>,
    return
  }
}

</mosaic_0001>

<llo_original>
// kernel: tpu_custom_call.1
$region0: #{tpu_custom_call.1}
  #allocation0 [shape = 'u32[]', space=smem, size = 0x4, offset = 0x4, fixed_abs, tag = 'smem constant byte address 0x4 - core index']
  #allocation1 [shape = 'u32[144,128]{1,0:T(1,128)}', space=vmem, size = 0x12000, scoped, tag = 'internal scratch']
  %s0 = inlined_call_operand.hbm [shape: f32[8,128], index: 0, kind: input, shape index: {}]
  %s1 = inlined_call_operand.hbm [shape: f32[8,256], index: 1, kind: input, shape index: {}]
  %s2 = inlined_call_operand.hbm [shape: f32[8,256], index: 2, kind: input, shape index: {}]
  %s3 = inlined_call_operand.vmem [shape: f32[8,64], index: 3, kind: input, shape index: {}]
  %s4 = inlined_call_operand.hbm [shape: f32[8,64], index: 4, kind: input, shape index: {}]
  %s5 = inlined_call_operand.vmem [shape: f32[1,128], index: 5, kind: input, shape index: {}]
  %s6 = inlined_call_operand.hbm [shape: bf16[128,256], index: 6, kind: input, shape index: {}]
  %s7 = inlined_call_operand.vmem [shape: f32[1,256], index: 7, kind: input, shape index: {}]
  %s8 = inlined_call_operand.hbm [shape: bf16[128,128], index: 8, kind: input, shape index: {}]
  %s9 = inlined_call_operand.vmem [shape: f32[1,128], index: 9, kind: input, shape index: {}]
  %s10 = inlined_call_operand.hbm [shape: bf16[128,512], index: 10, kind: input, shape index: {}]
  %s11 = inlined_call_operand.hbm [shape: bf16[256,128], index: 11, kind: input, shape index: {}]
  %s12 = inlined_call_operand.vmem [shape: f32[1,128], index: 12, kind: input, shape index: {}]
  %s13 = inlined_call_operand.hbm [shape: f32[1,128], index: 13, kind: output, shape index: {0}]
  %s14 = inlined_call_operand.hbm [shape: f32[2,16,64], index: 14, kind: output, shape index: {1}]
  %15 = xla_tuple %s13, %s14
  %s16 = sld [smem:[#allocation0]]
  $region102: #{tpu_custom_call.1} parent=0
    _
  %s18 = ssub.s32 1, %s16
  %s19 = scalar_select 0, %s18, %s16
  $region1: #{tpu_custom_call.1} parent=0
    #allocation2 [shape = 'u8[4096]{0}', space=vmem, size = 0x1000, scoped, tag = 'input window, operand 0, single buffered']
    #allocation3 [shape = 's32[1]{0}', space=sflag, size = 0x4, scoped, tag = 'scoped memory for tpu_custom_call.1']
    #allocation4 [shape = 's32[1]{0}', space=sflag, size = 0x4, scoped, tag = 'scoped memory for tpu_custom_call.1']
    #allocation5 [shape = 'u8[8192]{0}', space=vmem, size = 0x2000, scoped, tag = 'input window, operand 1, single buffered']
    #allocation6 [shape = 's32[1]{0}', space=sflag, size = 0x4, scoped, tag = 'scoped memory for tpu_custom_call.1']
    #allocation7 [shape = 'u8[8192]{0}', space=vmem, size = 0x2000, scoped, tag = 'input window, operand 2, single buffered']
    #allocation8 [shape = 'u8[4096]{0}', space=vmem, size = 0x1000, scoped, tag = 'input window, operand 4, single buffered']
    #allocation9 [shape = 's32[1]{0}', space=sflag, size = 0x4, scoped, tag = 'scoped memory for tpu_custom_call.1']
    #allocation10 [shape = 'u8[65536]{0}', space=vmem, size = 0x10000, scoped, tag = 'input window, operand 6, single buffered']
    #allocation11 [shape = 'u8[32768]{0}', space=vmem, size = 0x8000, scoped, tag = 'input window, operand 8, single buffered']
    #allocation12 [shape = 's32[1]{0}', space=sflag, size = 0x4, scoped, tag = 'scoped memory for tpu_custom_call.1']
    #allocation13 [shape = 'u8[131072]{0}', space=vmem, size = 0x20000, scoped, tag = 'input window, operand 10, single buffered']
    #allocation14 [shape = 'u8[65536]{0}', space=vmem, size = 0x10000, scoped, tag = 'input window, operand 11, single buffered']
    #allocation15 [shape = 's32[1]{0}', space=sflag, size = 0x4, scoped, tag = 'scoped memory for tpu_custom_call.1']
    #allocation16 [shape = 'u8[512]{0}', space=vmem, size = 0x400, scoped, tag = 'output window, operand 0, single buffered']
    #allocation17 [shape = 'u8[16384]{0}', space=vmem, size = 0x4000, scoped, tag = 'output window, operand 1, single buffered']
    #allocation18 [shape = 's32[1]{0}', space=sflag, size = 0x4, scoped, tag = 'scoped memory for tpu_custom_call.1']
    %20 = vsyncpa [#allocation3], 0
    %21 = vsyncpa [#allocation6], 0
    %22 = vsyncpa [#allocation9], 0
    %23 = vsyncpa [#allocation12], 0
    %24 = vsyncpa [#allocation15], 0
    %25 = vsyncpa [#allocation4], 0
    %26 = vsyncpa [#allocation18], 0
    // Predicated region
    $region2: #{tpu_custom_call.1} parent=1 // pred_check
      _
    $region3: #{tpu_custom_call.1} parent=1 // pred_check_branch
      %28 = sbr.rel (0) target = $region5
    $region4: #{tpu_custom_call.1} parent=1 // pred_region
      %s30 = ssub.s32 128, 128
      %31 = vsyncadd [#allocation3], %s30
      %s33 = sshll.u32 [#allocation2], 4
      %s34 = int_to_ptr.vmem [resolvable:$true] %s33
      %36 = dma.hbm_to_vmem [thread:$0]  %s0, 128, %s34, [#allocation3]
    $region5: #{tpu_custom_call.1} parent=1 // pred_fallthru
      _
    // Predicated region
    $region6: #{tpu_custom_call.1} parent=1 // pred_check
      _
    $region7: #{tpu_custom_call.1} parent=1 // pred_check_branch
      %38 = sbr.rel (0) target = $region9
    $region8: #{tpu_custom_call.1} parent=1 // pred_region
      %s40 = ssub.s32 256, 256
      %41 = vsyncadd [#allocation6], %s40
      %s43 = sshll.u32 [#allocation5], 4
      %s44 = int_to_ptr.vmem [resolvable:$true] %s43
      %46 = dma.hbm_to_vmem [thread:$0]  %s1, 256, %s44, [#allocation6]
    $region9: #{tpu_custom_call.1} parent=1 // pred_fallthru
      _
    // Predicated region
    $region10: #{tpu_custom_call.1} parent=1 // pred_check
      _
    $region11: #{tpu_custom_call.1} parent=1 // pred_check_branch
      %48 = sbr.rel (0) target = $region13
    $region12: #{tpu_custom_call.1} parent=1 // pred_region
      %s50 = ssub.s32 256, 256
      %51 = vsyncadd [#allocation6], %s50
      %s53 = sshll.u32 [#allocation7], 4
      %s54 = int_to_ptr.vmem [resolvable:$true] %s53
      %56 = dma.hbm_to_vmem [thread:$0]  %s2, 256, %s54, [#allocation6]
    $region13: #{tpu_custom_call.1} parent=1 // pred_fallthru
      _
    // Predicated region
    $region14: #{tpu_custom_call.1} parent=1 // pred_check
      _
    $region15: #{tpu_custom_call.1} parent=1 // pred_check_branch
      %58 = sbr.rel (0) target = $region17
    $region16: #{tpu_custom_call.1} parent=1 // pred_region
      _
    $region17: #{tpu_custom_call.1} parent=1 // pred_fallthru
      _
    // Predicated region
    $region18: #{tpu_custom_call.1} parent=1 // pred_check
      _
    $region19: #{tpu_custom_call.1} parent=1 // pred_check_branch
      %60 = sbr.rel (0) target = $region21
    $region20: #{tpu_custom_call.1} parent=1 // pred_region
      %s62 = ssub.s32 128, 128
      %63 = vsyncadd [#allocation9], %s62
      %s65 = sshll.u32 [#allocation8], 4
      %s66 = int_to_ptr.vmem [resolvable:$true] %s65
      %68 = dma.hbm_to_vmem [thread:$0]  %s4, 128, %s66, [#allocation9]
    $region21: #{tpu_custom_call.1} parent=1 // pred_fallthru
      _
    // Predicated region
    $region22: #{tpu_custom_call.1} parent=1 // pred_check
      _
    $region23: #{tpu_custom_call.1} parent=1 // pred_check_branch
      %70 = sbr.rel (0) target = $region25
    $region24: #{tpu_custom_call.1} parent=1 // pred_region
      _
    $region25: #{tpu_custom_call.1} parent=1 // pred_fallthru
      _
    // Predicated region
    $region26: #{tpu_custom_call.1} parent=1 // pred_check
      _
    $region27: #{tpu_custom_call.1} parent=1 // pred_check_branch
      %72 = sbr.rel (0) target = $region29
    $region28: #{tpu_custom_call.1} parent=1 // pred_region
      %s74 = ssub.s32 2048, 2048
      %75 = vsyncadd [#allocation9], %s74
      %s76 = sshll.u32 [#allocation10], 4
      %s77 = int_to_ptr.vmem [resolvable:$true] %s76
      %82 = dma.hbm_to_vmem [thread:$0]  %s6, 2048, %s77, [#allocation9], 128, 128, 8
    $region29: #{tpu_custom_call.1} parent=1 // pred_fallthru
      _
    // Predicated region
    $region30: #{tpu_custom_call.1} parent=1 // pred_check
      _
    $region31: #{tpu_custom_call.1} parent=1 // pred_check_branch
      %84 = sbr.rel (0) target = $region33
    $region32: #{tpu_custom_call.1} parent=1 // pred_region
      _
    $region33: #{tpu_custom_call.1} parent=1 // pred_fallthru
      _
    // Predicated region
    $region34: #{tpu_custom_call.1} parent=1 // pred_check
      _
    $region35: #{tpu_custom_call.1} parent=1 // pred_check_branch
      %86 = sbr.rel (0) target = $region37
    $region36: #{tpu_custom_call.1} parent=1 // pred_region
      %s88 = ssub.s32 1024, 1024
      %89 = vsyncadd [#allocation12], %s88
      %s90 = sshll.u32 [#allocation11], 4
      %s91 = int_to_ptr.vmem [resolvable:$true] %s90
      %96 = dma.hbm_to_vmem [thread:$0]  %s8, 1024, %s91, [#allocation12], 64, 64, 4
    $region37: #{tpu_custom_call.1} parent=1 // pred_fallthru
      _
    // Predicated region
    $region38: #{tpu_custom_call.1} parent=1 // pred_check
      _
    $region39: #{tpu_custom_call.1} parent=1 // pred_check_branch
      %98 = sbr.rel (0) target = $region41
    $region40: #{tpu_custom_call.1} parent=1 // pred_region
      _
    $region41: #{tpu_custom_call.1} parent=1 // pred_fallthru
      _
    // Predicated region
    $region42: #{tpu_custom_call.1} parent=1 // pred_check
      _
    $region43: #{tpu_custom_call.1} parent=1 // pred_check_branch
      %100 = sbr.rel (0) target = $region45
    $region44: #{tpu_custom_call.1} parent=1 // pred_region
      %s102 = ssub.s32 4096, 4096
      %103 = vsyncadd [#allocation12], %s102
      %s104 = sshll.u32 [#allocation13], 4
      %s105 = int_to_ptr.vmem [resolvable:$true] %s104
      %110 = dma.hbm_to_vmem [thread:$0]  %s10, 4096, %s105, [#allocation12], 256, 256, 16
    $region45: #{tpu_custom_call.1} parent=1 // pred_fallthru
      _
    // Predicated region
    $region46: #{tpu_custom_call.1} parent=1 // pred_check
      _
    $region47: #{tpu_custom_call.1} parent=1 // pred_check_branch
      %112 = sbr.rel (0) target = $region49
    $region48: #{tpu_custom_call.1} parent=1 // pred_region
      %s114 = ssub.s32 2048, 2048
      %115 = vsyncadd [#allocation15], %s114
      %s116 = sshll.u32 [#allocation14], 4
      %s117 = int_to_ptr.vmem [resolvable:$true] %s116
      %122 = dma.hbm_to_vmem [thread:$0]  %s11, 2048, %s117, [#allocation15], 64, 64, 4
    $region49: #{tpu_custom_call.1} parent=1 // pred_fallthru
      _
    // Predicated region
    $region50: #{tpu_custom_call.1} parent=1 // pred_check
      _
    $region51: #{tpu_custom_call.1} parent=1 // pred_check_branch
      %124 = sbr.rel (0) target = $region53
    $region52: #{tpu_custom_call.1} parent=1 // pred_region
      _
    $region53: #{tpu_custom_call.1} parent=1 // pred_fallthru
      _
    // Predicated region
    $region54: #{tpu_custom_call.1} parent=1 // pred_check
      _
    $region55: #{tpu_custom_call.1} parent=1 // pred_check_branch
      %126 = sbr.rel (0) target = $region57
    $region56: #{tpu_custom_call.1} parent=1 // pred_region
      %127 = dma.done [#allocation3], 128
    $region57: #{tpu_custom_call.1} parent=1 // pred_fallthru
      _
    // Predicated region
    $region58: #{tpu_custom_call.1} parent=1 // pred_check
      _
    $region59: #{tpu_custom_call.1} parent=1 // pred_check_branch
      %129 = sbr.rel (0) target = $region61
    $region60: #{tpu_custom_call.1} parent=1 // pred_region
      %130 = dma.done [#allocation6], 256
    $region61: #{tpu_custom_call.1} parent=1 // pred_fallthru
      _
    // Predicated region
    $region62: #{tpu_custom_call.1} parent=1 // pred_check
      _
    $region63: #{tpu_custom_call.1} parent=1 // pred_check_branch
      %132 = sbr.rel (0) target = $region65
    $region64: #{tpu_custom_call.1} parent=1 // pred_region
      %133 = dma.done [#allocation6], 256
    $region65: #{tpu_custom_call.1} parent=1 // pred_fallthru
      _
    // Predicated region
    $region66: #{tpu_custom_call.1} parent=1 // pred_check
      _
    $region67: #{tpu_custom_call.1} parent=1 // pred_check_branch
      %135 = sbr.rel (0) target = $region69
    $region68: #{tpu_custom_call.1} parent=1 // pred_region
      %136 = dma.done [#allocation9], 128
    $region69: #{tpu_custom_call.1} parent=1 // pred_fallthru
      _
    // Predicated region
    $region70: #{tpu_custom_call.1} parent=1 // pred_check
      _
    $region71: #{tpu_custom_call.1} parent=1 // pred_check_branch
      %138 = sbr.rel (0) target = $region73
    $region72: #{tpu_custom_call.1} parent=1 // pred_region
      %139 = dma.done [#allocation9], 2048
    $region73: #{tpu_custom_call.1} parent=1 // pred_fallthru
      _
    // Predicated region
    $region74: #{tpu_custom_call.1} parent=1 // pred_check
      _
    $region75: #{tpu_custom_call.1} parent=1 // pred_check_branch
      %141 = sbr.rel (0) target = $region77
    $region76: #{tpu_custom_call.1} parent=1 // pred_region
      %142 = dma.done [#allocation12], 1024
    $region77: #{tpu_custom_call.1} parent=1 // pred_fallthru
      _
    // Predicated region
    $region78: #{tpu_custom_call.1} parent=1 // pred_check
      _
    $region79: #{tpu_custom_call.1} parent=1 // pred_check_branch
      %144 = sbr.rel (0) target = $region81
    $region80: #{tpu_custom_call.1} parent=1 // pred_region
      %145 = dma.done [#allocation12], 4096
    $region81: #{tpu_custom_call.1} parent=1 // pred_fallthru
      _
    // Predicated region
    $region82: #{tpu_custom_call.1} parent=1 // pred_check
      _
    $region83: #{tpu_custom_call.1} parent=1 // pred_check_branch
      %147 = sbr.rel (0) target = $region85
    $region84: #{tpu_custom_call.1} parent=1 // pred_region
      %148 = dma.done [#allocation15], 2048
    $region85: #{tpu_custom_call.1} parent=1 // pred_fallthru
      _
    %v150 = vld [vmem:[#allocation2] sm:$0xff]
    %v151 = vld [vmem:[%s5] sm:$0x1]
    %v152 = vmul.f32 %v150, %v150
    %153 = vadd.xlane.f32.xlu0 %v152
    %v154 = vpop.xlane.xlu0 %153
    %v155 = vrcp.pop 128.0
    %v156 = vmul.f32 %v154, %v155
    %v157 = vadd.f32 %v156, 1e-05
    %v158 = vrsqrt.pop %v157
    %v159 = vmul.f32 %v150, %v158
    %v161 = vlaneseq
    %v162 = vshrl.u32 %v161, 7
    %v163 = vsub.s32 0, %v162
    %v164 = vrot.slane %v151, %v163
    %v166 = vmul.f32 %v159, %v164
    %v167 = vpack.c.bf16 %v166, %v166
    %v168 = vld [vmem:[#allocation10] sm:$0xff]
    %v169 = vld [vmem:[#allocation10 + $0x8] sm:$0xff]
    %v170 = vld [vmem:[#allocation10 + $0x10] sm:$0xff]
    %v171 = vld [vmem:[#allocation10 + $0x18] sm:$0xff]
    %v172 = vld [vmem:[#allocation10 + $0x20] sm:$0xff]
    %v173 = vld [vmem:[#allocation10 + $0x28] sm:$0xff]
    %v174 = vld [vmem:[#allocation10 + $0x30] sm:$0xff]
    %v175 = vld [vmem:[#allocation10 + $0x38] sm:$0xff]
    %v176 = vld [vmem:[#allocation10 + $0x40] sm:$0xff]
    %v177 = vld [vmem:[#allocation10 + $0x48] sm:$0xff]
    %v178 = vld [vmem:[#allocation10 + $0x50] sm:$0xff]
    %v179 = vld [vmem:[#allocation10 + $0x58] sm:$0xff]
    %v180 = vld [vmem:[#allocation10 + $0x60] sm:$0xff]
    %v181 = vld [vmem:[#allocation10 + $0x68] sm:$0xff]
    %v182 = vld [vmem:[#allocation10 + $0x70] sm:$0xff]
    %v183 = vld [vmem:[#allocation10 + $0x78] sm:$0xff]
    %v184 = vld [vmem:[%s7] sm:$0x3]
    %v186 = vlaneseq
    %v187 = vshrl.u32 %v186, 7
    %v188 = vsub.s32 0, %v187
    %v189 = vrot.slane %v184, %v188
    %v190 = vlaneseq
    %v191 = vshrl.u32 %v190, 7
    %v192 = vsub.s32 1, %v191
    %v193 = vrot.slane %v184, %v192
    %v212 = vunpack.c.l.b16 %v168
    %v213 = vunpack.c.h.b16 %v168
    %v214 = vunpack.c.l.b16 %v169
    %v215 = vunpack.c.h.b16 %v169
    %v216 = vunpack.c.l.b16 %v170
    %v217 = vunpack.c.h.b16 %v170
    %v218 = vunpack.c.l.b16 %v171
    %v219 = vunpack.c.h.b16 %v171
    %v220 = vunpack.c.l.b16 %v172
    %v221 = vunpack.c.h.b16 %v172
    %v222 = vunpack.c.l.b16 %v173
    %v223 = vunpack.c.h.b16 %v173
    %v224 = vunpack.c.l.b16 %v174
    %v225 = vunpack.c.h.b16 %v174
    %v226 = vunpack.c.l.b16 %v175
    %v227 = vunpack.c.h.b16 %v175
    %v228 = vunpack.c.l.b16 %v176
    %v229 = vunpack.c.h.b16 %v176
    %v230 = vunpack.c.l.b16 %v177
    %v231 = vunpack.c.h.b16 %v177
    %v232 = vunpack.c.l.b16 %v178
    %v233 = vunpack.c.h.b16 %v178
    %v234 = vunpack.c.l.b16 %v179
    %v235 = vunpack.c.h.b16 %v179
    %v236 = vunpack.c.l.b16 %v180
    %v237 = vunpack.c.h.b16 %v180
    %v238 = vunpack.c.l.b16 %v181
    %v239 = vunpack.c.h.b16 %v181
    %v240 = vunpack.c.l.b16 %v182
    %v241 = vunpack.c.h.b16 %v182
    %v242 = vunpack.c.l.b16 %v183
    %v243 = vunpack.c.h.b16 %v183
    %v244 = vpack.c.b16 %v214, %v212
    %v245 = vpack.c.b16 %v215, %v213
    %v246 = vpack.c.b16 %v218, %v216
    %v247 = vpack.c.b16 %v219, %v217
    %v248 = vpack.c.b16 %v222, %v220
    %v249 = vpack.c.b16 %v223, %v221
    %v250 = vpack.c.b16 %v226, %v224
    %v251 = vpack.c.b16 %v227, %v225
    %v252 = vpack.c.b16 %v230, %v228
    %v253 = vpack.c.b16 %v231, %v229
    %v254 = vpack.c.b16 %v234, %v232
    %v255 = vpack.c.b16 %v235, %v233
    %v256 = vpack.c.b16 %v238, %v236
    %v257 = vpack.c.b16 %v239, %v237
    %v258 = vpack.c.b16 %v242, %v240
    %v259 = vpack.c.b16 %v243, %v241
    %276 = vmatprep.subr.bf16.mxu0 %v245
    %277 = vmatpush1.bf16.msra.mxu0 %v244
    %278 = vmatprep.subr.bf16.mxu0 %v247
    %279 = vmatpush1.bf16.msra.mxu0 %v246
    %280 = vmatprep.subr.bf16.mxu0 %v249
    %281 = vmatpush1.bf16.msra.mxu0 %v248
    %282 = vmatprep.subr.bf16.mxu0 %v251
    %283 = vmatpush1.bf16.msra.mxu0 %v250
    %284 = vmatprep.subr.bf16.mxu0 %v253
    %285 = vmatpush1.bf16.msra.mxu0 %v252
    %286 = vmatprep.subr.bf16.mxu0 %v255
    %287 = vmatpush1.bf16.msra.mxu0 %v254
    %288 = vmatprep.subr.bf16.mxu0 %v257
    %289 = vmatpush1.bf16.msra.mxu0 %v256
    %290 = vmatprep.subr.bf16.mxu0 %v259
    %291 = vmatpush1.bf16.msra.mxu0 %v258
    %292 = vmatprep.subr.bf16.mxu0 0
    %293 = vmatpush1.bf16.msra.mxu0 0
    %294 = vmatprep.subr.bf16.mxu0 0
    %295 = vmatpush1.bf16.msra.mxu0 0
    %296 = vmatprep.subr.bf16.mxu0 0
    %297 = vmatpush1.bf16.msra.mxu0 0
    %298 = vmatprep.subr.bf16.mxu0 0
    %299 = vmatpush1.bf16.msra.mxu0 0
    %300 = vmatprep.subr.bf16.mxu0 0
    %301 = vmatpush1.bf16.msra.mxu0 0
    %302 = vmatprep.subr.bf16.mxu0 0
    %303 = vmatpush1.bf16.msra.mxu0 0
    %304 = vmatprep.subr.bf16.mxu0 0
    %305 = vmatpush1.bf16.msra.mxu0 0
    %306 = vmatprep.subr.bf16.mxu0 0
    %307 = vmatpush1.bf16.msra.mxu0 0
    %308 = vmatprep.mubr.bf16.mxu0 0
    %309 = vmatmul.mubr.bf16.gmra.mrb[0].mxu0 %v167
    %v310 = vpop.f32.mrb[0].mxu0
    %v311 = vadd.f32 %v189, %v310
    %v312 = vpop.f32.mrb[0].mxu0
    %v313 = vadd.f32 %v193, %v312
    %v314 = vpop.f32.mrb[0].mxu0
    %v315 = vpop.f32.mrb[0].mxu0
    %316 = vdwg.mxu0
    %v317 = vlaneseq
    %v318 = vand.u32 %v317, 127
    %v319 = vadd.s32 %v318, 128
    %vm320 = vcmp.lt.s32.totalorder %v318, 0
    %v321 = vsub.s32 0, %v318
    %v322 = vsel %vm320, %v321, %v318
    %v323 = vshrl.u32 %v322, 1
    %v324 = vand.u32 %v322, 1
    %v325 = vsub.s32 0, %v324
    %v326 = vsel %vm320, %v325, %v324
    %vm327 = vcmp.lt.s32.totalorder %v319, 0
    %v328 = vsub.s32 0, %v319
    %v329 = vsel %vm327, %v328, %v319
    %v330 = vshrl.u32 %v329, 1
    %v331 = vand.u32 %v329, 1
    %v332 = vsub.s32 0, %v331
    %v333 = vsel %vm327, %v332, %v331
    %vm334 = vcmp.ne.s32.totalorder %v326, 0
    %vm335 = vcmp.ne.s32.totalorder %v333, 0
    %vm336 = vcmp.lt.s32.totalorder %v326, 0
    %vm337 = vcmp.lt.s32.totalorder %v333, 0
    %vm338 = vmand %vm336, %vm334
    %vm339 = vmand %vm337, %vm335
    %v340 = vadd.s32 %v326, 2
    %v341 = vadd.s32 %v333, 2
    %v342 = vsel %vm338, %v340, %v326
    %v343 = vsel %vm339, %v341, %v333
    %vm344 = vcmp.eq.s32.totalorder %v342, 0
    %vm345 = vcmp.eq.s32.totalorder %v343, 0
    %346 = vrot.lane.b32.xlu0 %v311, 127
    %v347 = vpop.permute.xlu0 %346
    %348 = vrot.lane.b32.xlu0 %v313, 127
    %v349 = vpop.permute.xlu0 %348
    %vm350 = vcmp.lt.s32.totalorder %v318, 127
    %v351 = vsel %vm350, %v347, %v349
    %v352 = vsel %vm350, %v349, %v347
    %353 = vrot.lane.b32.xlu0 %v311, 1
    %v354 = vpop.permute.xlu0 %353
    %355 = vrot.lane.b32.xlu0 %v313, 1
    %v356 = vpop.permute.xlu0 %355
    %vm357 = vcmp.lt.s32.totalorder %v318, 1
    %v358 = vsel %vm357, %v354, %v356
    %v359 = vsel %vm357, %v356, %v354
    %v360 = vsel %vm344, 1, 0
    %v361 = vsel %vm345, 1, 0
    %vm362 = vcmp.eq.s32.totalorder %v360, 1
    %vm363 = vcmp.eq.s32.totalorder %v361, 1
    %v364 = vsel %vm362, %v351, %v359
    %v365 = vsel %vm363, %v352, %v358
    %v366 = vld [vmem:[#allocation7] sm:$0xff]
    %v367 = vld [vmem:[#allocation7 + $0x8] sm:$0xff]
    %v368 = vsub.f32 0.0, %v366
    %v369 = vsub.f32 0.0, %v367
    %v370 = vsel %vm362, %v368, %v366
    %v371 = vsel %vm363, %v369, %v367
    %v372 = vld [vmem:[#allocation5] sm:$0xff]
    %v373 = vld [vmem:[#allocation5 + $0x8] sm:$0xff]
    %v374 = vmul.f32 %v311, %v372
    %v375 = vmul.f32 %v313, %v373
    %v376 = vmul.f32 %v364, %v370
    %v377 = vmul.f32 %v365, %v371
    %v378 = vadd.f32 %v374, %v376
    %v379 = vadd.f32 %v375, %v377
    %v380 = vld [vmem:[%s3] sm:$0xff]
    %vm381 = vcmask 523264
    %382 = vst.msk [vmem:[#allocation17] sm:$0xff] %vm381, %v380
    %v383 = vld [vmem:[#allocation8] sm:$0xff]
    %s384 = scalar_lea.vmem [#allocation17], 16
    %385 = vst.msk [vmem:[%s384] sm:$0xff] %vm381, %v383
    %386 = vst.msk [vmem:[#allocation17 + $0x8] sm:$0xff] %vm381, %v379
    %388 = vrot.lane.b32.xlu0 %v379, 64
    %v389 = vpop.permute.xlu0 %388
    %391 = vst.msk [vmem:[%s384 + $0x8] sm:$0xff] %vm381, %v389
    %v392 = vld [vmem:[%s3] sm:$0xff]
    %v393 = vld [vmem:[#allocation8] sm:$0xff]
    %v394 = vlaneseq
    %v395 = vshrl.u32 %v394, 7
    %v396 = vadd.s32 %v395, 8
    %vm397 = vcmp.le.s32.totalorder %v318, %v396
    %v398 = vsel %vm397, 0.0, -1e+09
    %v399 = vpack.c.bf16 %v378, %v378
    %400 = vxpose.xlu0.b32.start [1/16] %v392, 128
    %401 = vxpose.xlu0.b32.cont [2/16] %v379, 128
    %402 = vxpose.xlu0.b32.cont [3/16] 0.0, 128
    %403 = vxpose.xlu0.b32.cont [4/16] 0.0, 128
    %404 = vxpose.xlu0.b32.cont [5/16] 0.0, 128
    %405 = vxpose.xlu0.b32.cont [6/16] 0.0, 128
    %406 = vxpose.xlu0.b32.cont [7/16] 0.0, 128
    %407 = vxpose.xlu0.b32.cont [8/16] 0.0, 128
    %408 = vxpose.xlu0.b32.cont [9/16] 0.0, 128
    %409 = vxpose.xlu0.b32.cont [10/16] 0.0, 128
    %410 = vxpose.xlu0.b32.cont [11/16] 0.0, 128
    %411 = vxpose.xlu0.b32.cont [12/16] 0.0, 128
    %412 = vxpose.xlu0.b32.cont [13/16] 0.0, 128
    %413 = vxpose.xlu0.b32.cont [14/16] 0.0, 128
    %414 = vxpose.xlu0.b32.cont [15/16] 0.0, 128
    %415 = vxpose.xlu0.b32.end [16/16] 0.0, 128
    %v416 = vpop.trf.xlu0
    %v417 = vpop.trf.xlu0
    %v418 = vpop.trf.xlu0
    %v419 = vpop.trf.xlu0
    %v420 = vpop.trf.xlu0
    %v421 = vpop.trf.xlu0
    %v422 = vpop.trf.xlu0
    %v423 = vpop.trf.xlu0
    %v424 = vpop.trf.xlu0
    %v425 = vpop.trf.xlu0
    %v426 = vpop.trf.xlu0
    %v427 = vpop.trf.xlu0
    %v428 = vpop.trf.xlu0
    %v429 = vpop.trf.xlu0
    %v430 = vpop.trf.xlu0
    %v431 = vpop.trf.xlu0
    %v432 = vpack.c.bf16 %v417, %v416
    %v433 = vpack.c.bf16 %v419, %v418
    %v434 = vpack.c.bf16 %v389, %v393
    %vm435 = vcmask 261120
    %v437 = vsel %vm435, %v399, 0
    %439 = vmatprep.subr.bf16.mxu0 0
    %440 = vmatpush1.bf16.msra.mxu0 %v432
    %441 = vmatprep.subr.bf16.mxu0 0
    %442 = vmatpush1.bf16.msra.mxu0 %v433
    %443 = vmatprep.subr.bf16.mxu0 0
    %444 = vmatpush1.bf16.msra.mxu0 0
    %445 = vmatprep.subr.bf16.mxu0 0
    %446 = vmatpush1.bf16.msra.mxu0 0
    %447 = vmatprep.subr.bf16.mxu0 0
    %448 = vmatpush1.bf16.msra.mxu0 0
    %449 = vmatprep.subr.bf16.mxu0 0
    %450 = vmatpush1.bf16.msra.mxu0 0
    %451 = vmatprep.subr.bf16.mxu0 0
    %452 = vmatpush1.bf16.msra.mxu0 0
    %453 = vmatprep.subr.bf16.mxu0 0
    %454 = vmatpush1.bf16.msra.mxu0 0
    %455 = vmatprep.subr.bf16.mxu0 0
    %456 = vmatpush1.bf16.msra.mxu0 0
    %457 = vmatprep.subr.bf16.mxu0 0
    %458 = vmatpush1.bf16.msra.mxu0 0
    %459 = vmatprep.subr.bf16.mxu0 0
    %460 = vmatpush1.bf16.msra.mxu0 0
    %461 = vmatprep.subr.bf16.mxu0 0
    %462 = vmatpush1.bf16.msra.mxu0 0
    %463 = vmatprep.subr.bf16.mxu0 0
    %464 = vmatpush1.bf16.msra.mxu0 0
    %465 = vmatprep.subr.bf16.mxu0 0
    %466 = vmatpush1.bf16.msra.mxu0 0
    %467 = vmatprep.subr.bf16.mxu0 0
    %468 = vmatpush1.bf16.msra.mxu0 0
    %469 = vmatprep.subr.bf16.mxu0 0
    %470 = vmatpush1.bf16.msra.mxu0 0
    %471 = vmatprep.mubr.bf16.mxu0 0
    %472 = vmatmul.mubr.bf16.gmra.mrb[0].mxu0 %v437
    %v473 = vpop.f32.mrb[0].mxu0
    %v474 = vadd.f32 0.0, %v473
    %v475 = vpop.f32.mrb[0].mxu0
    %v476 = vpop.f32.mrb[0].mxu0
    %v477 = vpop.f32.mrb[0].mxu0
    %478 = vdwg.mxu0
    %v479 = vmul.f32 %v474, 0.17677669
    %v480 = vadd.f32 %v479, %v398
    %vm481 = vcmask 130048
    %v482 = vsel %vm481, %v480, -inf
    %483 = vmax.xlane.f32.xlu0 %v482
    %v484 = vpop.xlane.xlu0 %483
    %v485 = vsub.f32 %v480, %v484
    %v486 = vmul.f32 %v485, 1.442695
    %v487 = vpow.pop %v486
    %v488 = vsel %vm481, %v487, 0.0
    %489 = vadd.xlane.f32.xlu0 %v488
    %v490 = vpop.xlane.xlu0 %489
    %v491 = vpack.c.bf16 %v487, %v487
    %v493 = vsel %vm481, %v491, 0
    %495 = vmatprep.subr.bf16.mxu0 0
    %496 = vmatpush1.bf16.msra.mxu0 %v434
    %497 = vmatprep.subr.bf16.mxu0 0
    %498 = vmatpush1.bf16.msra.mxu0 0
    %499 = vmatprep.subr.bf16.mxu0 0
    %500 = vmatpush1.bf16.msra.mxu0 0
    %501 = vmatprep.subr.bf16.mxu0 0
    %502 = vmatpush1.bf16.msra.mxu0 0
    %503 = vmatprep.subr.bf16.mxu0 0
    %504 = vmatpush1.bf16.msra.mxu0 0
    %505 = vmatprep.subr.bf16.mxu0 0
    %506 = vmatpush1.bf16.msra.mxu0 0
    %507 = vmatprep.subr.bf16.mxu0 0
    %508 = vmatpush1.bf16.msra.mxu0 0
    %509 = vmatprep.subr.bf16.mxu0 0
    %510 = vmatpush1.bf16.msra.mxu0 0
    %511 = vmatprep.subr.bf16.mxu0 0
    %512 = vmatpush1.bf16.msra.mxu0 0
    %513 = vmatprep.subr.bf16.mxu0 0
    %514 = vmatpush1.bf16.msra.mxu0 0
    %515 = vmatprep.subr.bf16.mxu0 0
    %516 = vmatpush1.bf16.msra.mxu0 0
    %517 = vmatprep.subr.bf16.mxu0 0
    %518 = vmatpush1.bf16.msra.mxu0 0
    %519 = vmatprep.subr.bf16.mxu0 0
    %520 = vmatpush1.bf16.msra.mxu0 0
    %521 = vmatprep.subr.bf16.mxu0 0
    %522 = vmatpush1.bf16.msra.mxu0 0
    %523 = vmatprep.subr.bf16.mxu0 0
    %524 = vmatpush1.bf16.msra.mxu0 0
    %525 = vmatprep.subr.bf16.mxu0 0
    %526 = vmatpush1.bf16.msra.mxu0 0
    %527 = vmatprep.mubr.bf16.mxu0 0
    %528 = vmatmul.mubr.bf16.gmra.mrb[0].mxu0 %v493
    %v529 = vpop.f32.mrb[0].mxu0
    %v530 = vadd.f32 0.0, %v529
    %v531 = vpop.f32.mrb[0].mxu0
    %v532 = vpop.f32.mrb[0].mxu0
    %v533 = vpop.f32.mrb[0].mxu0
    %534 = vdwg.mxu0
    %v535 = vrcp.pop %v490
    %v536 = vmul.f32 %v530, %v535
    %538 = vrot.lane.b32.xlu0 %v399, 96
    %v539 = vpop.permute.xlu0 %538
    %v541 = vsel %vm435, %v539, 0
    %543 = vmatprep.subr.bf16.mxu0 0
    %544 = vmatpush1.bf16.msra.mxu0 %v432
    %545 = vmatprep.subr.bf16.mxu0 0
    %546 = vmatpush1.bf16.msra.mxu0 %v433
    %547 = vmatprep.subr.bf16.mxu0 0
    %548 = vmatpush1.bf16.msra.mxu0 0
    %549 = vmatprep.subr.bf16.mxu0 0
    %550 = vmatpush1.bf16.msra.mxu0 0
    %551 = vmatprep.subr.bf16.mxu0 0
    %552 = vmatpush1.bf16.msra.mxu0 0
    %553 = vmatprep.subr.bf16.mxu0 0
    %554 = vmatpush1.bf16.msra.mxu0 0
    %555 = vmatprep.subr.bf16.mxu0 0
    %556 = vmatpush1.bf16.msra.mxu0 0
    %557 = vmatprep.subr.bf16.mxu0 0
    %558 = vmatpush1.bf16.msra.mxu0 0
    %559 = vmatprep.subr.bf16.mxu0 0
    %560 = vmatpush1.bf16.msra.mxu0 0
    %561 = vmatprep.subr.bf16.mxu0 0
    %562 = vmatpush1.bf16.msra.mxu0 0
    %563 = vmatprep.subr.bf16.mxu0 0
    %564 = vmatpush1.bf16.msra.mxu0 0
    %565 = vmatprep.subr.bf16.mxu0 0
    %566 = vmatpush1.bf16.msra.mxu0 0
    %567 = vmatprep.subr.bf16.mxu0 0
    %568 = vmatpush1.bf16.msra.mxu0 0
    %569 = vmatprep.subr.bf16.mxu0 0
    %570 = vmatpush1.bf16.msra.mxu0 0
    %571 = vmatprep.subr.bf16.mxu0 0
    %572 = vmatpush1.bf16.msra.mxu0 0
    %573 = vmatprep.subr.bf16.mxu0 0
    %574 = vmatpush1.bf16.msra.mxu0 0
    %575 = vmatprep.mubr.bf16.mxu0 0
    %576 = vmatmul.mubr.bf16.gmra.mrb[0].mxu0 %v541
    %v577 = vpop.f32.mrb[0].mxu0
    %v578 = vadd.f32 0.0, %v577
    %v579 = vpop.f32.mrb[0].mxu0
    %v580 = vpop.f32.mrb[0].mxu0
    %v581 = vpop.f32.mrb[0].mxu0
    %582 = vdwg.mxu0
    %v583 = vmul.f32 %v578, 0.17677669
    %v584 = vadd.f32 %v583, %v398
    %v585 = vsel %vm481, %v584, -inf
    %586 = vmax.xlane.f32.xlu0 %v585
    %v587 = vpop.xlane.xlu0 %586
    %v588 = vsub.f32 %v584, %v587
    %v589 = vmul.f32 %v588, 1.442695
    %v590 = vpow.pop %v589
    %v591 = vsel %vm481, %v590, 0.0
    %592 = vadd.xlane.f32.xlu0 %v591
    %v593 = vpop.xlane.xlu0 %592
    %v594 = vpack.c.bf16 %v590, %v590
    %v596 = vsel %vm481, %v594, 0
    %598 = vmatprep.subr.bf16.mxu0 0
    %599 = vmatpush1.bf16.msra.mxu0 %v434
    %600 = vmatprep.subr.bf16.mxu0 0
    %601 = vmatpush1.bf16.msra.mxu0 0
    %602 = vmatprep.subr.bf16.mxu0 0
    %603 = vmatpush1.bf16.msra.mxu0 0
    %604 = vmatprep.subr.bf16.mxu0 0
    %605 = vmatpush1.bf16.msra.mxu0 0
    %606 = vmatprep.subr.bf16.mxu0 0
    %607 = vmatpush1.bf16.msra.mxu0 0
    %608 = vmatprep.subr.bf16.mxu0 0
    %609 = vmatpush1.bf16.msra.mxu0 0
    %610 = vmatprep.subr.bf16.mxu0 0
    %611 = vmatpush1.bf16.msra.mxu0 0
    %612 = vmatprep.subr.bf16.mxu0 0
    %613 = vmatpush1.bf16.msra.mxu0 0
    %614 = vmatprep.subr.bf16.mxu0 0
    %615 = vmatpush1.bf16.msra.mxu0 0
    %616 = vmatprep.subr.bf16.mxu0 0
    %617 = vmatpush1.bf16.msra.mxu0 0
    %618 = vmatprep.subr.bf16.mxu0 0
    %619 = vmatpush1.bf16.msra.mxu0 0
    %620 = vmatprep.subr.bf16.mxu0 0
    %621 = vmatpush1.bf16.msra.mxu0 0
    %622 = vmatprep.subr.bf16.mxu0 0
    %623 = vmatpush1.bf16.msra.mxu0 0
    %624 = vmatprep.subr.bf16.mxu0 0
    %625 = vmatpush1.bf16.msra.mxu0 0
    %626 = vmatprep.subr.bf16.mxu0 0
    %627 = vmatpush1.bf16.msra.mxu0 0
    %628 = vmatprep.subr.bf16.mxu0 0
    %629 = vmatpush1.bf16.msra.mxu0 0
    %630 = vmatprep.mubr.bf16.mxu0 0
    %631 = vmatmul.mubr.bf16.gmra.mrb[0].mxu0 %v596
    %v632 = vpop.f32.mrb[0].mxu0
    %v633 = vadd.f32 0.0, %v632
    %v634 = vpop.f32.mrb[0].mxu0
    %v635 = vpop.f32.mrb[0].mxu0
    %v636 = vpop.f32.mrb[0].mxu0
    %637 = vdwg.mxu0
    %v638 = vrcp.pop %v593
    %v639 = vmul.f32 %v633, %v638
    %641 = vrot.lane.b32.xlu0 %v392, 96
    %v642 = vpop.permute.xlu0 %641
    %643 = vrot.lane.b32.xlu0 %v379, 96
    %v644 = vpop.permute.xlu0 %643
    %647 = vxpose.xlu0.b32.start [1/16] %v642, 128
    %648 = vxpose.xlu0.b32.cont [2/16] %v644, 128
    %649 = vxpose.xlu0.b32.cont [3/16] 0.0, 128
    %650 = vxpose.xlu0.b32.cont [4/16] 0.0, 128
    %651 = vxpose.xlu0.b32.cont [5/16] 0.0, 128
    %652 = vxpose.xlu0.b32.cont [6/16] 0.0, 128
    %653 = vxpose.xlu0.b32.cont [7/16] 0.0, 128
    %654 = vxpose.xlu0.b32.cont [8/16] 0.0, 128
    %655 = vxpose.xlu0.b32.cont [9/16] 0.0, 128
    %656 = vxpose.xlu0.b32.cont [10/16] 0.0, 128
    %657 = vxpose.xlu0.b32.cont [11/16] 0.0, 128
    %658 = vxpose.xlu0.b32.cont [12/16] 0.0, 128
    %659 = vxpose.xlu0.b32.cont [13/16] 0.0, 128
    %660 = vxpose.xlu0.b32.cont [14/16] 0.0, 128
    %661 = vxpose.xlu0.b32.cont [15/16] 0.0, 128
    %662 = vxpose.xlu0.b32.end [16/16] 0.0, 128
    %v663 = vpop.trf.xlu0
    %v664 = vpop.trf.xlu0
    %v665 = vpop.trf.xlu0
    %v666 = vpop.trf.xlu0
    %v667 = vpop.trf.xlu0
    %v668 = vpop.trf.xlu0
    %v669 = vpop.trf.xlu0
    %v670 = vpop.trf.xlu0
    %v671 = vpop.trf.xlu0
    %v672 = vpop.trf.xlu0
    %v673 = vpop.trf.xlu0
    %v674 = vpop.trf.xlu0
    %v675 = vpop.trf.xlu0
    %v676 = vpop.trf.xlu0
    %v677 = vpop.trf.xlu0
    %v678 = vpop.trf.xlu0
    %v679 = vpack.c.bf16 %v664, %v663
    %v680 = vpack.c.bf16 %v666, %v665
    %681 = vrot.lane.b32.xlu0 %v399, 64
    %v682 = vpop.permute.xlu0 %681
    %v684 = vsel %vm435, %v682, 0
    %686 = vmatprep.subr.bf16.mxu0 0
    %687 = vmatpush1.bf16.msra.mxu0 %v679
    %688 = vmatprep.subr.bf16.mxu0 0
    %689 = vmatpush1.bf16.msra.mxu0 %v680
    %690 = vmatprep.subr.bf16.mxu0 0
    %691 = vmatpush1.bf16.msra.mxu0 0
    %692 = vmatprep.subr.bf16.mxu0 0
    %693 = vmatpush1.bf16.msra.mxu0 0
    %694 = vmatprep.subr.bf16.mxu0 0
    %695 = vmatpush1.bf16.msra.mxu0 0
    %696 = vmatprep.subr.bf16.mxu0 0
    %697 = vmatpush1.bf16.msra.mxu0 0
    %698 = vmatprep.subr.bf16.mxu0 0
    %699 = vmatpush1.bf16.msra.mxu0 0
    %700 = vmatprep.subr.bf16.mxu0 0
    %701 = vmatpush1.bf16.msra.mxu0 0
    %702 = vmatprep.subr.bf16.mxu0 0
    %703 = vmatpush1.bf16.msra.mxu0 0
    %704 = vmatprep.subr.bf16.mxu0 0
    %705 = vmatpush1.bf16.msra.mxu0 0
    %706 = vmatprep.subr.bf16.mxu0 0
    %707 = vmatpush1.bf16.msra.mxu0 0
    %708 = vmatprep.subr.bf16.mxu0 0
    %709 = vmatpush1.bf16.msra.mxu0 0
    %710 = vmatprep.subr.bf16.mxu0 0
    %711 = vmatpush1.bf16.msra.mxu0 0
    %712 = vmatprep.subr.bf16.mxu0 0
    %713 = vmatpush1.bf16.msra.mxu0 0
    %714 = vmatprep.subr.bf16.mxu0 0
    %715 = vmatpush1.bf16.msra.mxu0 0
    %716 = vmatprep.subr.bf16.mxu0 0
    %717 = vmatpush1.bf16.msra.mxu0 0
    %718 = vmatprep.mubr.bf16.mxu0 0
    %719 = vmatmul.mubr.bf16.gmra.mrb[0].mxu0 %v684
    %v720 = vpop.f32.mrb[0].mxu0
    %v721 = vadd.f32 0.0, %v720
    %v722 = vpop.f32.mrb[0].mxu0
    %v723 = vpop.f32.mrb[0].mxu0
    %v724 = vpop.f32.mrb[0].mxu0
    %725 = vdwg.mxu0
    %v726 = vmul.f32 %v721, 0.17677669
    %v727 = vadd.f32 %v726, %v398
    %v728 = vsel %vm481, %v727, -inf
    %729 = vmax.xlane.f32.xlu0 %v728
    %v730 = vpop.xlane.xlu0 %729
    %v731 = vsub.f32 %v727, %v730
    %v732 = vmul.f32 %v731, 1.442695
    %v733 = vpow.pop %v732
    %v734 = vsel %vm481, %v733, 0.0
    %735 = vadd.xlane.f32.xlu0 %v734
    %v736 = vpop.xlane.xlu0 %735
    %v737 = vpack.c.bf16 %v733, %v733
    %739 = vrot.lane.b32.xlu0 %v434, 96
    %v740 = vpop.permute.xlu0 %739
    %v743 = vsel %vm481, %v737, 0
    %745 = vmatprep.subr.bf16.mxu0 0
    %746 = vmatpush1.bf16.msra.mxu0 %v740
    %747 = vmatprep.subr.bf16.mxu0 0
    %748 = vmatpush1.bf16.msra.mxu0 0
    %749 = vmatprep.subr.bf16.mxu0 0
    %750 = vmatpush1.bf16.msra.mxu0 0
    %751 = vmatprep.subr.bf16.mxu0 0
    %752 = vmatpush1.bf16.msra.mxu0 0
    %753 = vmatprep.subr.bf16.mxu0 0
    %754 = vmatpush1.bf16.msra.mxu0 0
    %755 = vmatprep.subr.bf16.mxu0 0
    %756 = vmatpush1.bf16.msra.mxu0 0
    %757 = vmatprep.subr.bf16.mxu0 0
    %758 = vmatpush1.bf16.msra.mxu0 0
    %759 = vmatprep.subr.bf16.mxu0 0
    %760 = vmatpush1.bf16.msra.mxu0 0
    %761 = vmatprep.subr.bf16.mxu0 0
    %762 = vmatpush1.bf16.msra.mxu0 0
    %763 = vmatprep.subr.bf16.mxu0 0
    %764 = vmatpush1.bf16.msra.mxu0 0
    %765 = vmatprep.subr.bf16.mxu0 0
    %766 = vmatpush1.bf16.msra.mxu0 0
    %767 = vmatprep.subr.bf16.mxu0 0
    %768 = vmatpush1.bf16.msra.mxu0 0
    %769 = vmatprep.subr.bf16.mxu0 0
    %770 = vmatpush1.bf16.msra.mxu0 0
    %771 = vmatprep.subr.bf16.mxu0 0
    %772 = vmatpush1.bf16.msra.mxu0 0
    %773 = vmatprep.subr.bf16.mxu0 0
    %774 = vmatpush1.bf16.msra.mxu0 0
    %775 = vmatprep.subr.bf16.mxu0 0
    %776 = vmatpush1.bf16.msra.mxu0 0
    %777 = vmatprep.mubr.bf16.mxu0 0
    %778 = vmatmul.mubr.bf16.gmra.mrb[0].mxu0 %v743
    %v779 = vpop.f32.mrb[0].mxu0
    %v780 = vadd.f32 0.0, %v779
    %v781 = vpop.f32.mrb[0].mxu0
    %v782 = vpop.f32.mrb[0].mxu0
    %v783 = vpop.f32.mrb[0].mxu0
    %784 = vdwg.mxu0
    %v785 = vrcp.pop %v736
    %v786 = vmul.f32 %v780, %v785
    %787 = vrot.lane.b32.xlu0 %v399, 32
    %v788 = vpop.permute.xlu0 %787
    %v790 = vsel %vm435, %v788, 0
    %792 = vmatprep.subr.bf16.mxu0 0
    %793 = vmatpush1.bf16.msra.mxu0 %v679
    %794 = vmatprep.subr.bf16.mxu0 0
    %795 = vmatpush1.bf16.msra.mxu0 %v680
    %796 = vmatprep.subr.bf16.mxu0 0
    %797 = vmatpush1.bf16.msra.mxu0 0
    %798 = vmatprep.subr.bf16.mxu0 0
    %799 = vmatpush1.bf16.msra.mxu0 0
    %800 = vmatprep.subr.bf16.mxu0 0
    %801 = vmatpush1.bf16.msra.mxu0 0
    %802 = vmatprep.subr.bf16.mxu0 0
    %803 = vmatpush1.bf16.msra.mxu0 0
    %804 = vmatprep.subr.bf16.mxu0 0
    %805 = vmatpush1.bf16.msra.mxu0 0
    %806 = vmatprep.subr.bf16.mxu0 0
    %807 = vmatpush1.bf16.msra.mxu0 0
    %808 = vmatprep.subr.bf16.mxu0 0
    %809 = vmatpush1.bf16.msra.mxu0 0
    %810 = vmatprep.subr.bf16.mxu0 0
    %811 = vmatpush1.bf16.msra.mxu0 0
    %812 = vmatprep.subr.bf16.mxu0 0
    %813 = vmatpush1.bf16.msra.mxu0 0
    %814 = vmatprep.subr.bf16.mxu0 0
    %815 = vmatpush1.bf16.msra.mxu0 0
    %816 = vmatprep.subr.bf16.mxu0 0
    %817 = vmatpush1.bf16.msra.mxu0 0
    %818 = vmatprep.subr.bf16.mxu0 0
    %819 = vmatpush1.bf16.msra.mxu0 0
    %820 = vmatprep.subr.bf16.mxu0 0
    %821 = vmatpush1.bf16.msra.mxu0 0
    %822 = vmatprep.subr.bf16.mxu0 0
    %823 = vmatpush1.bf16.msra.mxu0 0
    %824 = vmatprep.mubr.bf16.mxu0 0
    %825 = vmatmul.mubr.bf16.gmra.mrb[0].mxu0 %v790
    %v826 = vpop.f32.mrb[0].mxu0
    %v827 = vadd.f32 0.0, %v826
    %v828 = vpop.f32.mrb[0].mxu0
    %v829 = vpop.f32.mrb[0].mxu0
    %v830 = vpop.f32.mrb[0].mxu0
    %831 = vdwg.mxu0
    %v832 = vmul.f32 %v827, 0.17677669
    %v833 = vadd.f32 %v832, %v398
    %v834 = vsel %vm481, %v833, -inf
    %835 = vmax.xlane.f32.xlu0 %v834
    %v836 = vpop.xlane.xlu0 %835
    %v837 = vsub.f32 %v833, %v836
    %v838 = vmul.f32 %v837, 1.442695
    %v839 = vpow.pop %v838
    %v840 = vsel %vm481, %v839, 0.0
    %841 = vadd.xlane.f32.xlu0 %v840
    %v842 = vpop.xlane.xlu0 %841
    %v843 = vpack.c.bf16 %v839, %v839
    %v845 = vsel %vm481, %v843, 0
    %847 = vmatprep.subr.bf16.mxu0 0
    %848 = vmatpush1.bf16.msra.mxu0 %v740
    %849 = vmatprep.subr.bf16.mxu0 0
    %850 = vmatpush1.bf16.msra.mxu0 0
    %851 = vmatprep.subr.bf16.mxu0 0
    %852 = vmatpush1.bf16.msra.mxu0 0
    %853 = vmatprep.subr.bf16.mxu0 0
    %854 = vmatpush1.bf16.msra.mxu0 0
    %855 = vmatprep.subr.bf16.mxu0 0
    %856 = vmatpush1.bf16.msra.mxu0 0
    %857 = vmatprep.subr.bf16.mxu0 0
    %858 = vmatpush1.bf16.msra.mxu0 0
    %859 = vmatprep.subr.bf16.mxu0 0
    %860 = vmatpush1.bf16.msra.mxu0 0
    %861 = vmatprep.subr.bf16.mxu0 0
    %862 = vmatpush1.bf16.msra.mxu0 0
    %863 = vmatprep.subr.bf16.mxu0 0
    %864 = vmatpush1.bf16.msra.mxu0 0
    %865 = vmatprep.subr.bf16.mxu0 0
    %866 = vmatpush1.bf16.msra.mxu0 0
    %867 = vmatprep.subr.bf16.mxu0 0
    %868 = vmatpush1.bf16.msra.mxu0 0
    %869 = vmatprep.subr.bf16.mxu0 0
    %870 = vmatpush1.bf16.msra.mxu0 0
    %871 = vmatprep.subr.bf16.mxu0 0
    %872 = vmatpush1.bf16.msra.mxu0 0
    %873 = vmatprep.subr.bf16.mxu0 0
    %874 = vmatpush1.bf16.msra.mxu0 0
    %875 = vmatprep.subr.bf16.mxu0 0
    %876 = vmatpush1.bf16.msra.mxu0 0
    %877 = vmatprep.subr.bf16.mxu0 0
    %878 = vmatpush1.bf16.msra.mxu0 0
    %879 = vmatprep.mubr.bf16.mxu0 0
    %880 = vmatmul.mubr.bf16.gmra.mrb[0].mxu0 %v845
    %v881 = vpop.f32.mrb[0].mxu0
    %v882 = vadd.f32 0.0, %v881
    %v883 = vpop.f32.mrb[0].mxu0
    %v884 = vpop.f32.mrb[0].mxu0
    %v885 = vpop.f32.mrb[0].mxu0
    %886 = vdwg.mxu0
    %v887 = vrcp.pop %v842
    %v888 = vmul.f32 %v882, %v887
    %890 = vrot.lane.b32.xlu0 %v639, 32
    %v891 = vpop.permute.xlu0 %890
    %894 = vrot.lane.b32.xlu0 %v786, 64
    %v895 = vpop.permute.xlu0 %894
    %898 = vrot.lane.b32.xlu0 %v888, 96
    %v899 = vpop.permute.xlu0 %898
    %v901 = vsel %vm435, %v536, %v891
    %v902 = vsel %vm381, %v901, %v895
    %vm903 = vcmask 785408
    %v904 = vsel %vm903, %v902, %v899
    %v905 = vpack.c.bf16 %v904, %v904
    %v906 = vld [vmem:[#allocation11] sm:$0xf]
    %v907 = vld [vmem:[#allocation11 + $0x4] sm:$0xf]
    %v908 = vld [vmem:[#allocation11 + $0x8] sm:$0xf]
    %v909 = vld [vmem:[#allocation11 + $0xc] sm:$0xf]
    %v910 = vld [vmem:[#allocation11 + $0x10] sm:$0xf]
    %v911 = vld [vmem:[#allocation11 + $0x14] sm:$0xf]
    %v912 = vld [vmem:[#allocation11 + $0x18] sm:$0xf]
    %v913 = vld [vmem:[#allocation11 + $0x1c] sm:$0xf]
    %v914 = vld [vmem:[#allocation11 + $0x20] sm:$0xf]
    %v915 = vld [vmem:[#allocation11 + $0x24] sm:$0xf]
    %v916 = vld [vmem:[#allocation11 + $0x28] sm:$0xf]
    %v917 = vld [vmem:[#allocation11 + $0x2c] sm:$0xf]
    %v918 = vld [vmem:[#allocation11 + $0x30] sm:$0xf]
    %v919 = vld [vmem:[#allocation11 + $0x34] sm:$0xf]
    %v920 = vld [vmem:[#allocation11 + $0x38] sm:$0xf]
    %v921 = vld [vmem:[#allocation11 + $0x3c] sm:$0xf]
    %v938 = vunpack.c.l.b16 %v906
    %v939 = vunpack.c.l.b16 %v907
    %v940 = vunpack.c.l.b16 %v908
    %v941 = vunpack.c.l.b16 %v909
    %v942 = vunpack.c.l.b16 %v910
    %v943 = vunpack.c.l.b16 %v911
    %v944 = vunpack.c.l.b16 %v912
    %v945 = vunpack.c.l.b16 %v913
    %v946 = vunpack.c.l.b16 %v914
    %v947 = vunpack.c.l.b16 %v915
    %v948 = vunpack.c.l.b16 %v916
    %v949 = vunpack.c.l.b16 %v917
    %v950 = vunpack.c.l.b16 %v918
    %v951 = vunpack.c.l.b16 %v919
    %v952 = vunpack.c.l.b16 %v920
    %v953 = vunpack.c.l.b16 %v921
    %v954 = vpack.c.b16 %v939, %v938
    %v955 = vpack.c.b16 %v941, %v940
    %v956 = vpack.c.b16 %v943, %v942
    %v957 = vpack.c.b16 %v945, %v944
    %v958 = vpack.c.b16 %v947, %v946
    %v959 = vpack.c.b16 %v949, %v948
    %v960 = vpack.c.b16 %v951, %v950
    %v961 = vpack.c.b16 %v953, %v952
    %970 = vmatprep.subr.bf16.mxu0 0
    %971 = vmatpush1.bf16.msra.mxu0 %v954
    %972 = vmatprep.subr.bf16.mxu0 0
    %973 = vmatpush1.bf16.msra.mxu0 %v955
    %974 = vmatprep.subr.bf16.mxu0 0
    %975 = vmatpush1.bf16.msra.mxu0 %v956
    %976 = vmatprep.subr.bf16.mxu0 0
    %977 = vmatpush1.bf16.msra.mxu0 %v957
    %978 = vmatprep.subr.bf16.mxu0 0
    %979 = vmatpush1.bf16.msra.mxu0 %v958
    %980 = vmatprep.subr.bf16.mxu0 0
    %981 = vmatpush1.bf16.msra.mxu0 %v959
    %982 = vmatprep.subr.bf16.mxu0 0
    %983 = vmatpush1.bf16.msra.mxu0 %v960
    %984 = vmatprep.subr.bf16.mxu0 0
    %985 = vmatpush1.bf16.msra.mxu0 %v961
    %986 = vmatprep.subr.bf16.mxu0 0
    %987 = vmatpush1.bf16.msra.mxu0 0
    %988 = vmatprep.subr.bf16.mxu0 0
    %989 = vmatpush1.bf16.msra.mxu0 0
    %990 = vmatprep.subr.bf16.mxu0 0
    %991 = vmatpush1.bf16.msra.mxu0 0
    %992 = vmatprep.subr.bf16.mxu0 0
    %993 = vmatpush1.bf16.msra.mxu0 0
    %994 = vmatprep.subr.bf16.mxu0 0
    %995 = vmatpush1.bf16.msra.mxu0 0
    %996 = vmatprep.subr.bf16.mxu0 0
    %997 = vmatpush1.bf16.msra.mxu0 0
    %998 = vmatprep.subr.bf16.mxu0 0
    %999 = vmatpush1.bf16.msra.mxu0 0
    %1000 = vmatprep.subr.bf16.mxu0 0
    %1001 = vmatpush1.bf16.msra.mxu0 0
    %1002 = vmatprep.mubr.bf16.mxu0 0
    %1003 = vmatmul.mubr.bf16.gmra.mrb[0].mxu0 %v905
    %v1004 = vpop.f32.mrb[0].mxu0
    %v1005 = vadd.f32 0.0, %v1004
    %v1006 = vpop.f32.mrb[0].mxu0
    %v1007 = vpop.f32.mrb[0].mxu0
    %v1008 = vpop.f32.mrb[0].mxu0
    %1009 = vdwg.mxu0
    %v1010 = vadd.f32 %v150, %v1005
    %v1011 = vld [vmem:[%s9] sm:$0x1]
    %v1012 = vmul.f32 %v1010, %v1010
    %1013 = vadd.xlane.f32.xlu0 %v1012
    %v1014 = vpop.xlane.xlu0 %1013
    %v1015 = vmul.f32 %v1014, %v155
    %v1016 = vadd.f32 %v1015, 1e-05
    %v1017 = vrsqrt.pop %v1016
    %v1018 = vmul.f32 %v1010, %v1017
    %v1020 = vlaneseq
    %v1021 = vshrl.u32 %v1020, 7
    %v1022 = vsub.s32 0, %v1021
    %v1023 = vrot.slane %v1011, %v1022
    %v1025 = vmul.f32 %v1018, %v1023
    %v1026 = vpack.c.bf16 %v1025, %v1025
    %v1027 = vld [vmem:[#allocation13] sm:$0xff]
    %v1028 = vld [vmem:[#allocation13 + $0x8] sm:$0xff]
    %v1029 = vld [vmem:[#allocation13 + $0x10] sm:$0xff]
    %v1030 = vld [vmem:[#allocation13 + $0x18] sm:$0xff]
    %v1031 = vld [vmem:[#allocation13 + $0x20] sm:$0xff]
    %v1032 = vld [vmem:[#allocation13 + $0x28] sm:$0xff]
    %v1033 = vld [vmem:[#allocation13 + $0x30] sm:$0xff]
    %v1034 = vld [vmem:[#allocation13 + $0x38] sm:$0xff]
    %v1035 = vld [vmem:[#allocation13 + $0x40] sm:$0xff]
    %v1036 = vld [vmem:[#allocation13 + $0x48] sm:$0xff]
    %v1037 = vld [vmem:[#allocation13 + $0x50] sm:$0xff]
    %v1038 = vld [vmem:[#allocation13 + $0x58] sm:$0xff]
    %v1039 = vld [vmem:[#allocation13 + $0x60] sm:$0xff]
    %v1040 = vld [vmem:[#allocation13 + $0x68] sm:$0xff]
    %v1041 = vld [vmem:[#allocation13 + $0x70] sm:$0xff]
    %v1042 = vld [vmem:[#allocation13 + $0x78] sm:$0xff]
    %v1043 = vld [vmem:[#allocation13 + $0x80] sm:$0xff]
    %v1044 = vld [vmem:[#allocation13 + $0x88] sm:$0xff]
    %v1045 = vld [vmem:[#allocation13 + $0x90] sm:$0xff]
    %v1046 = vld [vmem:[#allocation13 + $0x98] sm:$0xff]
    %v1047 = vld [vmem:[#allocation13 + $0xa0] sm:$0xff]
    %v1048 = vld [vmem:[#allocation13 + $0xa8] sm:$0xff]
    %v1049 = vld [vmem:[#allocation13 + $0xb0] sm:$0xff]
    %v1050 = vld [vmem:[#allocation13 + $0xb8] sm:$0xff]
    %v1051 = vld [vmem:[#allocation13 + $0xc0] sm:$0xff]
    %v1052 = vld [vmem:[#allocation13 + $0xc8] sm:$0xff]
    %v1053 = vld [vmem:[#allocation13 + $0xd0] sm:$0xff]
    %v1054 = vld [vmem:[#allocation13 + $0xd8] sm:$0xff]
    %v1055 = vld [vmem:[#allocation13 + $0xe0] sm:$0xff]
    %v1056 = vld [vmem:[#allocation13 + $0xe8] sm:$0xff]
    %v1057 = vld [vmem:[#allocation13 + $0xf0] sm:$0xff]
    %v1058 = vld [vmem:[#allocation13 + $0xf8] sm:$0xff]
    %v1091 = vunpack.c.l.b16 %v1027
    %v1092 = vunpack.c.h.b16 %v1027
    %v1093 = vunpack.c.l.b16 %v1028
    %v1094 = vunpack.c.h.b16 %v1028
    %v1095 = vunpack.c.l.b16 %v1029
    %v1096 = vunpack.c.h.b16 %v1029
    %v1097 = vunpack.c.l.b16 %v1030
    %v1098 = vunpack.c.h.b16 %v1030
    %v1099 = vunpack.c.l.b16 %v1031
    %v1100 = vunpack.c.h.b16 %v1031
    %v1101 = vunpack.c.l.b16 %v1032
    %v1102 = vunpack.c.h.b16 %v1032
    %v1103 = vunpack.c.l.b16 %v1033
    %v1104 = vunpack.c.h.b16 %v1033
    %v1105 = vunpack.c.l.b16 %v1034
    %v1106 = vunpack.c.h.b16 %v1034
    %v1107 = vunpack.c.l.b16 %v1035
    %v1108 = vunpack.c.h.b16 %v1035
    %v1109 = vunpack.c.l.b16 %v1036
    %v1110 = vunpack.c.h.b16 %v1036
    %v1111 = vunpack.c.l.b16 %v1037
    %v1112 = vunpack.c.h.b16 %v1037
    %v1113 = vunpack.c.l.b16 %v1038
    %v1114 = vunpack.c.h.b16 %v1038
    %v1115 = vunpack.c.l.b16 %v1039
    %v1116 = vunpack.c.h.b16 %v1039
    %v1117 = vunpack.c.l.b16 %v1040
    %v1118 = vunpack.c.h.b16 %v1040
    %v1119 = vunpack.c.l.b16 %v1041
    %v1120 = vunpack.c.h.b16 %v1041
    %v1121 = vunpack.c.l.b16 %v1042
    %v1122 = vunpack.c.h.b16 %v1042
    %v1123 = vunpack.c.l.b16 %v1043
    %v1124 = vunpack.c.h.b16 %v1043
    %v1125 = vunpack.c.l.b16 %v1044
    %v1126 = vunpack.c.h.b16 %v1044
    %v1127 = vunpack.c.l.b16 %v1045
    %v1128 = vunpack.c.h.b16 %v1045
    %v1129 = vunpack.c.l.b16 %v1046
    %v1130 = vunpack.c.h.b16 %v1046
    %v1131 = vunpack.c.l.b16 %v1047
    %v1132 = vunpack.c.h.b16 %v1047
    %v1133 = vunpack.c.l.b16 %v1048
    %v1134 = vunpack.c.h.b16 %v1048
    %v1135 = vunpack.c.l.b16 %v1049
    %v1136 = vunpack.c.h.b16 %v1049
    %v1137 = vunpack.c.l.b16 %v1050
    %v1138 = vunpack.c.h.b16 %v1050
    %v1139 = vunpack.c.l.b16 %v1051
    %v1140 = vunpack.c.h.b16 %v1051
    %v1141 = vunpack.c.l.b16 %v1052
    %v1142 = vunpack.c.h.b16 %v1052
    %v1143 = vunpack.c.l.b16 %v1053
    %v1144 = vunpack.c.h.b16 %v1053
    %v1145 = vunpack.c.l.b16 %v1054
    %v1146 = vunpack.c.h.b16 %v1054
    %v1147 = vunpack.c.l.b16 %v1055
    %v1148 = vunpack.c.h.b16 %v1055
    %v1149 = vunpack.c.l.b16 %v1056
    %v1150 = vunpack.c.h.b16 %v1056
    %v1151 = vunpack.c.l.b16 %v1057
    %v1152 = vunpack.c.h.b16 %v1057
    %v1153 = vunpack.c.l.b16 %v1058
    %v1154 = vunpack.c.h.b16 %v1058
    %v1155 = vpack.c.b16 %v1095, %v1091
    %v1156 = vpack.c.b16 %v1096, %v1092
    %v1157 = vpack.c.b16 %v1097, %v1093
    %v1158 = vpack.c.b16 %v1098, %v1094
    %v1159 = vpack.c.b16 %v1103, %v1099
    %v1160 = vpack.c.b16 %v1104, %v1100
    %v1161 = vpack.c.b16 %v1105, %v1101
    %v1162 = vpack.c.b16 %v1106, %v1102
    %v1163 = vpack.c.b16 %v1111, %v1107
    %v1164 = vpack.c.b16 %v1112, %v1108
    %v1165 = vpack.c.b16 %v1113, %v1109
    %v1166 = vpack.c.b16 %v1114, %v1110
    %v1167 = vpack.c.b16 %v1119, %v1115
    %v1168 = vpack.c.b16 %v1120, %v1116
    %v1169 = vpack.c.b16 %v1121, %v1117
    %v1170 = vpack.c.b16 %v1122, %v1118
    %v1171 = vpack.c.b16 %v1127, %v1123
    %v1172 = vpack.c.b16 %v1128, %v1124
    %v1173 = vpack.c.b16 %v1129, %v1125
    %v1174 = vpack.c.b16 %v1130, %v1126
    %v1175 = vpack.c.b16 %v1135, %v1131
    %v1176 = vpack.c.b16 %v1136, %v1132
    %v1177 = vpack.c.b16 %v1137, %v1133
    %v1178 = vpack.c.b16 %v1138, %v1134
    %v1179 = vpack.c.b16 %v1143, %v1139
    %v1180 = vpack.c.b16 %v1144, %v1140
    %v1181 = vpack.c.b16 %v1145, %v1141
    %v1182 = vpack.c.b16 %v1146, %v1142
    %v1183 = vpack.c.b16 %v1151, %v1147
    %v1184 = vpack.c.b16 %v1152, %v1148
    %v1185 = vpack.c.b16 %v1153, %v1149
    %v1186 = vpack.c.b16 %v1154, %v1150
    %1219 = vmatprep.subr.bf16.mxu0 %v1156
    %1220 = vmatpush1.bf16.msra.mxu0 %v1155
    %1221 = vmatprep.subr.bf16.mxu0 %v1160
    %1222 = vmatpush1.bf16.msra.mxu0 %v1159
    %1223 = vmatprep.subr.bf16.mxu0 %v1164
    %1224 = vmatpush1.bf16.msra.mxu0 %v1163
    %1225 = vmatprep.subr.bf16.mxu0 %v1168
    %1226 = vmatpush1.bf16.msra.mxu0 %v1167
    %1227 = vmatprep.subr.bf16.mxu0 %v1172
    %1228 = vmatpush1.bf16.msra.mxu0 %v1171
    %1229 = vmatprep.subr.bf16.mxu0 %v1176
    %1230 = vmatpush1.bf16.msra.mxu0 %v1175
    %1231 = vmatprep.subr.bf16.mxu0 %v1180
    %1232 = vmatpush1.bf16.msra.mxu0 %v1179
    %1233 = vmatprep.subr.bf16.mxu0 %v1184
    %1234 = vmatpush1.bf16.msra.mxu0 %v1183
    %1235 = vmatprep.subr.bf16.mxu0 0
    %1236 = vmatpush1.bf16.msra.mxu0 0
    %1237 = vmatprep.subr.bf16.mxu0 0
    %1238 = vmatpush1.bf16.msra.mxu0 0
    %1239 = vmatprep.subr.bf16.mxu0 0
    %1240 = vmatpush1.bf16.msra.mxu0 0
    %1241 = vmatprep.subr.bf16.mxu0 0
    %1242 = vmatpush1.bf16.msra.mxu0 0
    %1243 = vmatprep.subr.bf16.mxu0 0
    %1244 = vmatpush1.bf16.msra.mxu0 0
    %1245 = vmatprep.subr.bf16.mxu0 0
    %1246 = vmatpush1.bf16.msra.mxu0 0
    %1247 = vmatprep.subr.bf16.mxu0 0
    %1248 = vmatpush1.bf16.msra.mxu0 0
    %1249 = vmatprep.subr.bf16.mxu0 0
    %1250 = vmatpush1.bf16.msra.mxu0 0
    %1251 = vmatprep.mubr.bf16.mxu0 0
    %1252 = vmatmul.mubr.bf16.gmra.mrb[0].mxu0 %v1026
    %v1253 = vpop.f32.mrb[0].mxu0
    %v1254 = vadd.f32 0.0, %v1253
    %v1255 = vpop.f32.mrb[0].mxu0
    %v1256 = vadd.f32 0.0, %v1255
    %v1257 = vpop.f32.mrb[0].mxu0
    %v1258 = vpop.f32.mrb[0].mxu0
    %1259 = vdwg.mxu0
    %1260 = vmatprep.subr.bf16.mxu0 %v1158
    %1261 = vmatpush1.bf16.msra.mxu0 %v1157
    %1262 = vmatprep.subr.bf16.mxu0 %v1162
    %1263 = vmatpush1.bf16.msra.mxu0 %v1161
    %1264 = vmatprep.subr.bf16.mxu0 %v1166
    %1265 = vmatpush1.bf16.msra.mxu0 %v1165
    %1266 = vmatprep.subr.bf16.mxu0 %v1170
    %1267 = vmatpush1.bf16.msra.mxu0 %v1169
    %1268 = vmatprep.subr.bf16.mxu0 %v1174
    %1269 = vmatpush1.bf16.msra.mxu0 %v1173
    %1270 = vmatprep.subr.bf16.mxu0 %v1178
    %1271 = vmatpush1.bf16.msra.mxu0 %v1177
    %1272 = vmatprep.subr.bf16.mxu0 %v1182
    %1273 = vmatpush1.bf16.msra.mxu0 %v1181
    %1274 = vmatprep.subr.bf16.mxu0 %v1186
    %1275 = vmatpush1.bf16.msra.mxu0 %v1185
    %1276 = vmatprep.subr.bf16.mxu0 0
    %1277 = vmatpush1.bf16.msra.mxu0 0
    %1278 = vmatprep.subr.bf16.mxu0 0
    %1279 = vmatpush1.bf16.msra.mxu0 0
    %1280 = vmatprep.subr.bf16.mxu0 0
    %1281 = vmatpush1.bf16.msra.mxu0 0
    %1282 = vmatprep.subr.bf16.mxu0 0
    %1283 = vmatpush1.bf16.msra.mxu0 0
    %1284 = vmatprep.subr.bf16.mxu0 0
    %1285 = vmatpush1.bf16.msra.mxu0 0
    %1286 = vmatprep.subr.bf16.mxu0 0
    %1287 = vmatpush1.bf16.msra.mxu0 0
    %1288 = vmatprep.subr.bf16.mxu0 0
    %1289 = vmatpush1.bf16.msra.mxu0 0
    %1290 = vmatprep.subr.bf16.mxu0 0
    %1291 = vmatpush1.bf16.msra.mxu0 0
    %1292 = vmatprep.mubr.bf16.mxu0 0
    %1293 = vmatmul.mubr.bf16.gmra.mrb[0].mxu0 %v1026
    %v1294 = vpop.f32.mrb[0].mxu0
    %v1295 = vadd.f32 0.0, %v1294
    %v1296 = vpop.f32.mrb[0].mxu0
    %v1297 = vadd.f32 0.0, %v1296
    %v1298 = vpop.f32.mrb[0].mxu0
    %v1299 = vpop.f32.mrb[0].mxu0
    %1300 = vdwg.mxu0
    %v1301 = vsub.f32 0.0, %v1254
    %v1302 = vsub.f32 0.0, %v1256
    %v1303 = vmul.f32 %v1301, 1.442695
    %v1304 = vpow.pop %v1303
    %v1305 = vmul.f32 %v1302, 1.442695
    %v1306 = vpow.pop %v1305
    %v1307 = vadd.f32 %v1304, 1.0
    %v1308 = vadd.f32 %v1306, 1.0
    %v1309 = vrcp.pop %v1307
    %v1310 = vmul.f32 %v1254, %v1309
    %v1311 = vrcp.pop %v1308
    %v1312 = vmul.f32 %v1256, %v1311
    %v1313 = vmul.f32 %v1310, %v1295
    %v1314 = vmul.f32 %v1312, %v1297
    %v1315 = vpack.c.bf16 %v1313, %v1313
    %v1316 = vpack.c.bf16 %v1314, %v1314
    %v1317 = vld [vmem:[#allocation14] sm:$0xf]
    %v1318 = vld [vmem:[#allocation14 + $0x4] sm:$0xf]
    %v1319 = vld [vmem:[#allocation14 + $0x8] sm:$0xf]
    %v1320 = vld [vmem:[#allocation14 + $0xc] sm:$0xf]
    %v1321 = vld [vmem:[#allocation14 + $0x10] sm:$0xf]
    %v1322 = vld [vmem:[#allocation14 + $0x14] sm:$0xf]
    %v1323 = vld [vmem:[#allocation14 + $0x18] sm:$0xf]
    %v1324 = vld [vmem:[#allocation14 + $0x1c] sm:$0xf]
    %v1325 = vld [vmem:[#allocation14 + $0x20] sm:$0xf]
    %v1326 = vld [vmem:[#allocation14 + $0x24] sm:$0xf]
    %v1327 = vld [vmem:[#allocation14 + $0x28] sm:$0xf]
    %v1328 = vld [vmem:[#allocation14 + $0x2c] sm:$0xf]
    %v1329 = vld [vmem:[#allocation14 + $0x30] sm:$0xf]
    %v1330 = vld [vmem:[#allocation14 + $0x34] sm:$0xf]
    %v1331 = vld [vmem:[#allocation14 + $0x38] sm:$0xf]
    %v1332 = vld [vmem:[#allocation14 + $0x3c] sm:$0xf]
    %v1333 = vld [vmem:[#allocation14 + $0x40] sm:$0xf]
    %v1334 = vld [vmem:[#allocation14 + $0x44] sm:$0xf]
    %v1335 = vld [vmem:[#allocation14 + $0x48] sm:$0xf]
    %v1336 = vld [vmem:[#allocation14 + $0x4c] sm:$0xf]
    %v1337 = vld [vmem:[#allocation14 + $0x50] sm:$0xf]
    %v1338 = vld [vmem:[#allocation14 + $0x54] sm:$0xf]
    %v1339 = vld [vmem:[#allocation14 + $0x58] sm:$0xf]
    %v1340 = vld [vmem:[#allocation14 + $0x5c] sm:$0xf]
    %v1341 = vld [vmem:[#allocation14 + $0x60] sm:$0xf]
    %v1342 = vld [vmem:[#allocation14 + $0x64] sm:$0xf]
    %v1343 = vld [vmem:[#allocation14 + $0x68] sm:$0xf]
    %v1344 = vld [vmem:[#allocation14 + $0x6c] sm:$0xf]
    %v1345 = vld [vmem:[#allocation14 + $0x70] sm:$0xf]
    %v1346 = vld [vmem:[#allocation14 + $0x74] sm:$0xf]
    %v1347 = vld [vmem:[#allocation14 + $0x78] sm:$0xf]
    %v1348 = vld [vmem:[#allocation14 + $0x7c] sm:$0xf]
    %v1381 = vunpack.c.l.b16 %v1317
    %v1382 = vunpack.c.l.b16 %v1318
    %v1383 = vunpack.c.l.b16 %v1319
    %v1384 = vunpack.c.l.b16 %v1320
    %v1385 = vunpack.c.l.b16 %v1321
    %v1386 = vunpack.c.l.b16 %v1322
    %v1387 = vunpack.c.l.b16 %v1323
    %v1388 = vunpack.c.l.b16 %v1324
    %v1389 = vunpack.c.l.b16 %v1325
    %v1390 = vunpack.c.l.b16 %v1326
    %v1391 = vunpack.c.l.b16 %v1327
    %v1392 = vunpack.c.l.b16 %v1328
    %v1393 = vunpack.c.l.b16 %v1329
    %v1394 = vunpack.c.l.b16 %v1330
    %v1395 = vunpack.c.l.b16 %v1331
    %v1396 = vunpack.c.l.b16 %v1332
    %v1397 = vunpack.c.l.b16 %v1333
    %v1398 = vunpack.c.l.b16 %v1334
    %v1399 = vunpack.c.l.b16 %v1335
    %v1400 = vunpack.c.l.b16 %v1336
    %v1401 = vunpack.c.l.b16 %v1337
    %v1402 = vunpack.c.l.b16 %v1338
    %v1403 = vunpack.c.l.b16 %v1339
    %v1404 = vunpack.c.l.b16 %v1340
    %v1405 = vunpack.c.l.b16 %v1341
    %v1406 = vunpack.c.l.b16 %v1342
    %v1407 = vunpack.c.l.b16 %v1343
    %v1408 = vunpack.c.l.b16 %v1344
    %v1409 = vunpack.c.l.b16 %v1345
    %v1410 = vunpack.c.l.b16 %v1346
    %v1411 = vunpack.c.l.b16 %v1347
    %v1412 = vunpack.c.l.b16 %v1348
    %v1413 = vpack.c.b16 %v1382, %v1381
    %v1414 = vpack.c.b16 %v1384, %v1383
    %v1415 = vpack.c.b16 %v1386, %v1385
    %v1416 = vpack.c.b16 %v1388, %v1387
    %v1417 = vpack.c.b16 %v1390, %v1389
    %v1418 = vpack.c.b16 %v1392, %v1391
    %v1419 = vpack.c.b16 %v1394, %v1393
    %v1420 = vpack.c.b16 %v1396, %v1395
    %v1421 = vpack.c.b16 %v1398, %v1397
    %v1422 = vpack.c.b16 %v1400, %v1399
    %v1423 = vpack.c.b16 %v1402, %v1401
    %v1424 = vpack.c.b16 %v1404, %v1403
    %v1425 = vpack.c.b16 %v1406, %v1405
    %v1426 = vpack.c.b16 %v1408, %v1407
    %v1427 = vpack.c.b16 %v1410, %v1409
    %v1428 = vpack.c.b16 %v1412, %v1411
    %1445 = vmatprep.subr.bf16.mxu0 0
    %1446 = vmatpush1.bf16.msra.mxu0 %v1413
    %1447 = vmatprep.subr.bf16.mxu0 0
    %1448 = vmatpush1.bf16.msra.mxu0 %v1414
    %1449 = vmatprep.subr.bf16.mxu0 0
    %1450 = vmatpush1.bf16.msra.mxu0 %v1415
    %1451 = vmatprep.subr.bf16.mxu0 0
    %1452 = vmatpush1.bf16.msra.mxu0 %v1416
    %1453 = vmatprep.subr.bf16.mxu0 0
    %1454 = vmatpush1.bf16.msra.mxu0 %v1417
    %1455 = vmatprep.subr.bf16.mxu0 0
    %1456 = vmatpush1.bf16.msra.mxu0 %v1418
    %1457 = vmatprep.subr.bf16.mxu0 0
    %1458 = vmatpush1.bf16.msra.mxu0 %v1419
    %1459 = vmatprep.subr.bf16.mxu0 0
    %1460 = vmatpush1.bf16.msra.mxu0 %v1420
    %1461 = vmatprep.subr.bf16.mxu0 0
    %1462 = vmatpush1.bf16.msra.mxu0 %v1421
    %1463 = vmatprep.subr.bf16.mxu0 0
    %1464 = vmatpush1.bf16.msra.mxu0 %v1422
    %1465 = vmatprep.subr.bf16.mxu0 0
    %1466 = vmatpush1.bf16.msra.mxu0 %v1423
    %1467 = vmatprep.subr.bf16.mxu0 0
    %1468 = vmatpush1.bf16.msra.mxu0 %v1424
    %1469 = vmatprep.subr.bf16.mxu0 0
    %1470 = vmatpush1.bf16.msra.mxu0 %v1425
    %1471 = vmatprep.subr.bf16.mxu0 0
    %1472 = vmatpush1.bf16.msra.mxu0 %v1426
    %1473 = vmatprep.subr.bf16.mxu0 0
    %1474 = vmatpush1.bf16.msra.mxu0 %v1427
    %1475 = vmatprep.subr.bf16.mxu0 0
    %1476 = vmatpush1.bf16.msra.mxu0 %v1428
    %1477 = vmatprep.mubr.bf16.mxu0 %v1316
    %1478 = vmatmul.mubr.bf16.gmra.mrb[0].mxu0 %v1315
    %v1479 = vpop.f32.mrb[0].mxu0
    %v1480 = vadd.f32 0.0, %v1479
    %v1481 = vpop.f32.mrb[0].mxu0
    %v1482 = vpop.f32.mrb[0].mxu0
    %v1483 = vpop.f32.mrb[0].mxu0
    %1484 = vdwg.mxu0
    %v1485 = vadd.f32 %v1010, %v1480
    %v1486 = vld [vmem:[%s12] sm:$0x1]
    %v1487 = vmul.f32 %v1485, %v1485
    %vm1488 = vcmask 1047559
    %v1489 = vsel %vm1488, %v1487, 0.0
    %1490 = vadd.xlane.f32.xlu0 %v1489
    %v1491 = vpop.xlane.xlu0 %1490
    %v1492 = vmul.f32 %v1491, %v155
    %v1493 = vadd.f32 %v1492, 1e-05
    %v1494 = vrsqrt.pop %v1493
    %v1495 = vmul.f32 %v1485, %v1494
    %v1497 = vlaneseq
    %v1498 = vshrl.u32 %v1497, 7
    %v1499 = vsub.s32 0, %v1498
    %v1500 = vrot.slane %v1486, %v1499
    %v1502 = vmul.f32 %v1495, %v1500
    %1503 = vst [vmem:[#allocation16 - $0x7] sm:$0x80] %v1502
    // Predicated region
    $region86: #{tpu_custom_call.1} parent=1 // pred_check
      _
    $region87: #{tpu_custom_call.1} parent=1 // pred_check_branch
      %1505 = sbr.rel (0) target = $region89
    $region88: #{tpu_custom_call.1} parent=1 // pred_region
      %s1507 = ssub.s32 16, 16
      %1508 = vsyncadd [#allocation4], %s1507
      %s1510 = sshll.u32 [#allocation16], 4
      %s1511 = int_to_ptr.vmem [resolvable:$true] %s1510
      %1513 = dma.vmem_to_hbm [thread:$0]  %s1511, 16, %s13, [#allocation4]
    $region89: #{tpu_custom_call.1} parent=1 // pred_fallthru
      _
    // Predicated region
    $region90: #{tpu_custom_call.1} parent=1 // pred_check
      _
    $region91: #{tpu_custom_call.1} parent=1 // pred_check_branch
      %1515 = sbr.rel (0) target = $region93
    $region92: #{tpu_custom_call.1} parent=1 // pred_region
      %s1517 = ssub.s32 512, 512
      %1518 = vsyncadd [#allocation18], %s1517
      %s1519 = sshll.u32 [#allocation17], 4
      %s1520 = int_to_ptr.vmem [resolvable:$true] %s1519
      %1525 = dma.vmem_to_hbm [thread:$0]  %s1520, 512, %s14, [#allocation18], 128, 128, 8
    $region93: #{tpu_custom_call.1} parent=1 // pred_fallthru
      _
    // Predicated region
    $region94: #{tpu_custom_call.1} parent=1 // pred_check
      _
    $region95: #{tpu_custom_call.1} parent=1 // pred_check_branch
      %1527 = sbr.rel (0) target = $region97
    $region96: #{tpu_custom_call.1} parent=1 // pred_region
      %1528 = dma.done [#allocation4], 16
    $region97: #{tpu_custom_call.1} parent=1 // pred_fallthru
      _
    // Predicated region
    $region98: #{tpu_custom_call.1} parent=1 // pred_check
      _
    $region99: #{tpu_custom_call.1} parent=1 // pred_check_branch
      %1530 = sbr.rel (0) target = $region101
    $region100: #{tpu_custom_call.1} parent=1 // pred_region
      %1531 = dma.done [#allocation18], 512
    $region101: #{tpu_custom_call.1} parent=1 // pred_fallthru
      _
    %1532 = vsyncpa [#allocation3], 1
    %1533 = vsyncpa [#allocation6], 1
    %1534 = vsyncpa [#allocation9], 1
    %1535 = vsyncpa [#allocation12], 1
    %1536 = vsyncpa [#allocation15], 1
    %1537 = vsyncpa [#allocation4], 1
    %1538 = vsyncpa [#allocation18], 1

</llo_original>
